<compile_context>
chip_gen: v5e
topology: v5e:2x2
jax: 0.10.0
libtpu: 0.0.40
codegen_flags: <defaults>
</compile_context>

<pallas_src>
import math

import jax
import jax.numpy as jnp
from jax.experimental import pallas as pl
from jax.experimental.pallas import tpu as pltpu


def _round_up(x, m):
    return ((x + m - 1) // m) * m


def _pick_time_block(T, cap=16):
    """Largest divisor of T that is <= cap (timesteps per grid step)."""
    tb = 1
    for d in range(1, min(T, cap) + 1):
        if T % d == 0:
            tb = d
    return tb


# ----------------------------------------------------------------------------
# Pallas kernel: layer-0 LSTM recurrence (time-blocked) + fused linear head
# ----------------------------------------------------------------------------
def _pmlstm_kernel(x_ref, wih_ref, whh_ref, b_ref, wlin_ref, blin_ref,
                   out_ref, gx_sc, h_sc, c_sc):
    """One time-block of the LSTM recurrence.

    x_ref    : (Tb*Bp, Fp)   time-block of inputs, time-major, (t, b) flattened
    wih_ref  : (Fp, 4*Hp)    input->gate weights (gate-block padded, transposed)
    whh_ref  : (Hp, 4*Hp)    hidden->gate weights
    b_ref    : (1, 4*Hp)     combined bias b_ih + b_hh
    wlin_ref : (Hp, OUTP)    linear head weight (only lane 0 is real)
    blin_ref : (1, OUTP)     linear head bias
    out_ref  : (Bp, OUTP)    prediction; resident block, written once at the end
    gx_sc    : (Tb*Bp, 4*Hp) VMEM scratch for the hoisted input projection
    h_sc/c_sc: (Bp, Hp)      recurrent state carried across time blocks
    """
    tb = pl.program_id(0)

    @pl.when(tb == 0)
    def _init():
        h_sc[...] = jnp.zeros_like(h_sc)
        c_sc[...] = jnp.zeros_like(c_sc)

    # Hoisted, time-parallel input projection for all Tb timesteps: one MXU
    # matmul (Tb*Bp, Fp) x (Fp, 4Hp), bias added once.
    gx_sc[...] = (jnp.dot(x_ref[...], wih_ref[...],
                          preferred_element_type=jnp.float32) + b_ref[...])

    Bp, Hp = h_sc.shape
    n_steps = x_ref.shape[0] // Bp
    mm_dtype = whh_ref.dtype

    def step(t, carry):
        h, c = carry
        row = pl.multiple_of(t * Bp, Bp)
        gates = gx_sc[pl.ds(row, Bp), :] + jnp.dot(
            h.astype(mm_dtype), whh_ref[...],
            preferred_element_type=jnp.float32)          # (Bp, 4Hp)
        # One full-width sigmoid pass on the EUP; tanh only on the g block.
        sig = jax.nn.sigmoid(gates)
        i_g = sig[:, 0 * Hp:1 * Hp]
        f_g = sig[:, 1 * Hp:2 * Hp]
        o_g = sig[:, 3 * Hp:4 * Hp]
        g_g = jnp.tanh(gates[:, 2 * Hp:3 * Hp])
        c_new = f_g * c + i_g * g_g
        h_new = o_g * jnp.tanh(c_new)
        return h_new, c_new

    h, c = jax.lax.fori_loop(0, n_steps, step, (h_sc[...], c_sc[...]),
                             unroll=True)
    h_sc[...] = h
    c_sc[...] = c

    # Fused linear head on the final hidden state: written exactly once.
    @pl.when(tb == pl.num_programs(0) - 1)
    def _head():
        out_ref[...] = (jnp.dot(h.astype(wlin_ref.dtype), wlin_ref[...],
                                preferred_element_type=jnp.float32)
                        + blin_ref[...])


# ----------------------------------------------------------------------------
# Wrapper
# ----------------------------------------------------------------------------
def pmlstm_forward(x, w_ih, w_hh, b_ih, b_hh, w_lin, b_lin, *,
                   matmul_dtype=jnp.float32, time_block_cap=16):
    """x: (B, T, F) batch_first.  Returns (B,) = linear(hn[0]).flatten()."""
    B, T, F = x.shape
    H4 = w_ih.shape[0]
    H = H4 // 4

    Bp = _round_up(max(B, 1), 8)       # sublane-dense batch
    Hp = _round_up(max(H, 1), 128)     # lane-dense hidden / gate blocks
    Fp = _round_up(max(F, 1), 128)     # lane-dense input features
    OUTP = 128                         # lane-dense head output (col 0 real)
    Tb = _pick_time_block(T, time_block_cap)

    # --- pad + repack weights so each gate block sits on a 128-lane boundary -
    w_ih_t = jnp.asarray(w_ih, jnp.float32).T        # (F, 4H)
    w_hh_t = jnp.asarray(w_hh, jnp.float32).T        # (H, 4H)
    bias = jnp.asarray(b_ih + b_hh, jnp.float32)     # (4H,)

    wih_p = jnp.zeros((Fp, 4 * Hp), jnp.float32)
    whh_p = jnp.zeros((Hp, 4 * Hp), jnp.float32)
    b_p = jnp.zeros((1, 4 * Hp), jnp.float32)
    for k in range(4):                               # PyTorch gate order i,f,g,o
        wih_p = wih_p.at[:F, k * Hp:k * Hp + H].set(w_ih_t[:, k * H:(k + 1) * H])
        whh_p = whh_p.at[:H, k * Hp:k * Hp + H].set(w_hh_t[:, k * H:(k + 1) * H])
        b_p = b_p.at[0, k * Hp:k * Hp + H].set(bias[k * H:(k + 1) * H])

    wlin_p = jnp.zeros((Hp, OUTP), jnp.float32).at[:H, 0].set(
        jnp.asarray(w_lin, jnp.float32).reshape(-1))
    blin_p = jnp.zeros((1, OUTP), jnp.float32).at[0, 0].set(
        jnp.asarray(b_lin, jnp.float32).reshape(-1)[0])

    # matmul operand dtype (bf16 recommended on v6e/v7x; f32 keeps tight parity)
    wih_p = wih_p.astype(matmul_dtype)
    whh_p = whh_p.astype(matmul_dtype)
    wlin_p = wlin_p.astype(matmul_dtype)

    # --- pad input to (T*Bp, Fp), time-major, (t, b) flattened on sublanes ----
    x_tbf = jnp.transpose(jnp.asarray(x, jnp.float32), (1, 0, 2))   # (T, B, F)
    x_pad = jnp.zeros((T, Bp, Fp), jnp.float32).at[:, :B, :F].set(x_tbf)
    x2d = x_pad.reshape(T * Bp, Fp).astype(matmul_dtype)

    # TODO(synk): for v7x, consider a leading "parallel" batch-block grid axis
    # (2 TensorCores) and single-buffered resident weights; not needed at these
    # shapes and omitted to keep the sequential recurrence simple.
    out = pl.pallas_call(
        _pmlstm_kernel,
        out_shape=jax.ShapeDtypeStruct((Bp, OUTP), jnp.float32),
        grid_spec=pltpu.PrefetchScalarGridSpec(
            num_scalar_prefetch=0,
            grid=(T // Tb,),
            in_specs=[
                pl.BlockSpec((Tb * Bp, Fp), lambda i: (i, 0)),
                pl.BlockSpec((Fp, 4 * Hp), lambda i: (0, 0)),
                pl.BlockSpec((Hp, 4 * Hp), lambda i: (0, 0)),
                pl.BlockSpec((1, 4 * Hp), lambda i: (0, 0)),
                pl.BlockSpec((Hp, OUTP), lambda i: (0, 0)),
                pl.BlockSpec((1, OUTP), lambda i: (0, 0)),
            ],
            out_specs=pl.BlockSpec((Bp, OUTP), lambda i: (0, 0)),
            scratch_shapes=[
                pltpu.VMEM((Tb * Bp, 4 * Hp), jnp.float32),   # hoisted gates_x
                pltpu.VMEM((Bp, Hp), jnp.float32),            # h state
                pltpu.VMEM((Bp, Hp), jnp.float32),            # c state
            ],
        ),
        compiler_params=pltpu.CompilerParams(
            dimension_semantics=("arbitrary",)),
    )(x2d, wih_p, whh_p, b_p, wlin_p, blin_p)

    return out[:B, 0]


class PMLSTMPallas:
    """Pallas port of the PyTorch PMLSTM forward (eval mode).

    The PyTorch forward feeds hn[0] (layer 0's final hidden state) into the
    linear head, so layers >= 1 never influence the output; the Pallas forward
    therefore runs only layer 0 (identical results, no dead compute).
    """

    def __init__(self, num_sensors, hidden_units, num_layers, dropout, key,
                 matmul_dtype=jnp.float32):
        self.num_sensors = num_sensors
        self.hidden_units = hidden_units
        self.num_layers = num_layers
        self.dropout = dropout  # TODO(synk): inter-layer dropout (training-only) not applied; eval semantics.
        self.matmul_dtype = matmul_dtype

        k = 1.0 / math.sqrt(hidden_units)
        keys = jax.random.split(key, 4 * num_layers + 2)
        self.layers = []
        for l in range(num_layers):
            in_sz = num_sensors if l == 0 else hidden_units
            w_ih = jax.random.uniform(keys[4 * l + 0], (4 * hidden_units, in_sz),
                                      jnp.float32, -k, k)
            w_hh = jax.random.uniform(keys[4 * l + 1], (4 * hidden_units, hidden_units),
                                      jnp.float32, -k, k)
            b_ih = jax.random.uniform(keys[4 * l + 2], (4 * hidden_units,),
                                      jnp.float32, -k, k)
            b_hh = jax.random.uniform(keys[4 * l + 3], (4 * hidden_units,),
                                      jnp.float32, -k, k)
            self.layers.append((w_ih, w_hh, b_ih, b_hh))
        self.w_lin = jax.random.uniform(keys[-2], (1, hidden_units), jnp.float32, -k, k)
        self.b_lin = jax.random.uniform(keys[-1], (1,), jnp.float32, -k, k)

    def __call__(self, x):
        # x: (B, T, num_sensors), batch_first, same as the PyTorch module.
        w_ih, w_hh, b_ih, b_hh = self.layers[0]
        return pmlstm_forward(x, w_ih, w_hh, b_ih, b_hh, self.w_lin, self.b_lin,
                              matmul_dtype=self.matmul_dtype)


# ----------------------------------------------------------------------------
# Pure-JAX reference (full multi-layer LSTM, then linear(hn[0]) like PyTorch)
# ----------------------------------------------------------------------------
def _reference(model, x):
    x_tbf = jnp.transpose(x.astype(jnp.float32), (1, 0, 2))
    H = model.hidden_units
    inp = x_tbf
    h_lasts = []
    for (w_ih, w_hh, b_ih, b_hh) in model.layers:
        T, B, _ = inp.shape

        def step(carry, x_t):
            h, c = carry
            gates = x_t @ w_ih.T + h @ w_hh.T + b_ih + b_hh
            i = jax.nn.sigmoid(gates[:, 0 * H:1 * H])
            f = jax.nn.sigmoid(gates[:, 1 * H:2 * H])
            g = jnp.tanh(gates[:, 2 * H:3 * H])
            o = jax.nn.sigmoid(gates[:, 3 * H:4 * H])
            c_new = f * c + i * g
            h_new = o * jnp.tanh(c_new)
            return (h_new, c_new), h_new

        (h_f, _), y = jax.lax.scan(step, (jnp.zeros((B, H)), jnp.zeros((B, H))), inp)
        h_lasts.append(h_f)
        inp = y
    return (h_lasts[0] @ model.w_lin.T + model.b_lin).reshape(-1)


if __name__ == "__main__":
    key = jax.random.PRNGKey(0)
    k_param, k_x = jax.random.split(key)

    num_sensors, hidden_units, num_layers, dropout = 4, 32, 2, 0.0
    batch, seq = 2, 8

    model = PMLSTMPallas(num_sensors, hidden_units, num_layers, dropout, k_param)
    x = jax.random.normal(k_x, (batch, seq, num_sensors), jnp.float32)

    out = model(x)
    out = jax.block_until_ready(out)

    ref = _reference(model, x)
    assert out.shape == (batch,)
    assert jnp.allclose(out, ref, atol=1e-5, rtol=1e-5)

    print("KERNEL_OK")
</pallas_src>

<mosaic_0001>
module attributes {stable_mosaic.version = 11 : i64} {
  func.func @_pmlstm_kernel(%arg0: i32, %arg1: memref<64x128xf32, #tpu.memory_space<vmem>>, %arg2: memref<128x512xf32, #tpu.memory_space<vmem>>, %arg3: memref<128x512xf32, #tpu.memory_space<vmem>>, %arg4: memref<1x512xf32, #tpu.memory_space<vmem>>, %arg5: memref<128x128xf32, #tpu.memory_space<vmem>>, %arg6: memref<1x128xf32, #tpu.memory_space<vmem>>, %arg7: memref<8x128xf32, #tpu.memory_space<vmem>>, %arg8: memref<64x512xf32, #tpu.memory_space<vmem>>, %arg9: memref<8x128xf32, #tpu.memory_space<vmem>>, %arg10: memref<8x128xf32, #tpu.memory_space<vmem>>) attributes {dimension_semantics = [#tpu.dimension_semantics<arbitrary>], iteration_bounds = array<i64: 1>, scalar_prefetch = 0 : i64, scratch_operands = 3 : i64, tpu.core_type = #tpu.core_type<tc>, window_params = [{transform_indices = @transform_0, window_bounds = array<i64: 64, 128>}, {pipeline_mode = #tpu.pipeline_mode<synchronous>, transform_indices = @transform_1, window_bounds = array<i64: 128, 512>}, {pipeline_mode = #tpu.pipeline_mode<synchronous>, transform_indices = @transform_2, window_bounds = array<i64: 128, 512>}, {pipeline_mode = #tpu.pipeline_mode<synchronous>, transform_indices = @transform_3, window_bounds = array<i64: 1, 512>}, {pipeline_mode = #tpu.pipeline_mode<synchronous>, transform_indices = @transform_4, window_bounds = array<i64: 128, 128>}, {pipeline_mode = #tpu.pipeline_mode<synchronous>, transform_indices = @transform_5, window_bounds = array<i64: 1, 128>}, {pipeline_mode = #tpu.pipeline_mode<synchronous>, transform_indices = @transform_6, window_bounds = array<i64: 8, 128>}]} {
    %c0_i32 = arith.constant 0 : i32
    %0 = arith.cmpi eq, %arg0, %c0_i32 : i32
    %1 = arith.extui %0 : i1 to i32
    %c0_i32_0 = arith.constant 0 : i32
    %2 = arith.cmpi ne, %1, %c0_i32_0 : i32
    scf.if %2 {
      %cst_67 = arith.constant 0.000000e+00 : f32
      %193 = vector.broadcast %cst_67 : f32 to vector<8x128xf32>
      %c0_68 = arith.constant 0 : index
      %c0_69 = arith.constant 0 : index
      %194 = vector.load %arg9[%c0_68, %c0_69] : memref<8x128xf32, #tpu.memory_space<vmem>>, vector<8x128xf32>
      tpu.vector_store %arg9[%c0_68, %c0_69], %193 {strides = array<i32>} : memref<8x128xf32, #tpu.memory_space<vmem>>, vector<8x128xf32>,
      %cst_70 = arith.constant 0.000000e+00 : f32
      %195 = vector.broadcast %cst_70 : f32 to vector<8x128xf32>
      %c0_71 = arith.constant 0 : index
      %c0_72 = arith.constant 0 : index
      %196 = vector.load %arg10[%c0_71, %c0_72] : memref<8x128xf32, #tpu.memory_space<vmem>>, vector<8x128xf32>
      tpu.vector_store %arg10[%c0_71, %c0_72], %195 {strides = array<i32>} : memref<8x128xf32, #tpu.memory_space<vmem>>, vector<8x128xf32>,
    } else {
    }
    %c0 = arith.constant 0 : index
    %c0_1 = arith.constant 0 : index
    %3 = vector.load %arg1[%c0, %c0_1] : memref<64x128xf32, #tpu.memory_space<vmem>>, vector<64x128xf32>
    %c0_2 = arith.constant 0 : index
    %c0_3 = arith.constant 0 : index
    %4 = vector.load %arg2[%c0_2, %c0_3] : memref<128x512xf32, #tpu.memory_space<vmem>>, vector<128x512xf32>
    %cst = arith.constant dense<0.000000e+00> : vector<64x512xf32>
    %5 = tpu.matmul %3, %4, %cst {dimension_numbers = #tpu.dot_dimension_numbers<[1], [0], [0], [1], [0, 0, 1, 1], [], []>} : vector<64x128xf32>, vector<128x512xf32>, vector<64x512xf32> -> vector<64x512xf32>
    %c0_4 = arith.constant 0 : index
    %c0_5 = arith.constant 0 : index
    %6 = vector.load %arg4[%c0_4, %c0_5] : memref<1x512xf32, #tpu.memory_space<vmem>>, vector<1x512xf32>
    %7 = vector.broadcast %6 : vector<1x512xf32> to vector<64x512xf32>
    %8 = arith.addf %5, %7 : vector<64x512xf32>
    %c0_6 = arith.constant 0 : index
    %c0_7 = arith.constant 0 : index
    %9 = vector.load %arg8[%c0_6, %c0_7] : memref<64x512xf32, #tpu.memory_space<vmem>>, vector<64x512xf32>
    tpu.vector_store %arg8[%c0_6, %c0_7], %8 {strides = array<i32>} : memref<64x512xf32, #tpu.memory_space<vmem>>, vector<64x512xf32>,
    %c0_8 = arith.constant 0 : index
    %c0_9 = arith.constant 0 : index
    %10 = vector.load %arg9[%c0_8, %c0_9] : memref<8x128xf32, #tpu.memory_space<vmem>>, vector<8x128xf32>
    %c0_10 = arith.constant 0 : index
    %c0_11 = arith.constant 0 : index
    %11 = vector.load %arg10[%c0_10, %c0_11] : memref<8x128xf32, #tpu.memory_space<vmem>>, vector<8x128xf32>
    %c0_i32_12 = arith.constant 0 : i32
    %c8_i32 = arith.constant 8 : i32
    %12 = arith.muli %c0_i32_12, %c8_i32 : i32
    %13 = tpu.assume_multiple %12, 8 : i32
    %14 = arith.index_cast %13 : i32 to index
    %c0_13 = arith.constant 0 : index
    %15 = vector.load %arg8[%14, %c0_13] : memref<64x512xf32, #tpu.memory_space<vmem>>, vector<8x512xf32>
    %c0_14 = arith.constant 0 : index
    %c0_15 = arith.constant 0 : index
    %16 = vector.load %arg3[%c0_14, %c0_15] : memref<128x512xf32, #tpu.memory_space<vmem>>, vector<128x512xf32>
    %cst_16 = arith.constant dense<0.000000e+00> : vector<8x512xf32>
    %17 = tpu.matmul %10, %16, %cst_16 {dimension_numbers = #tpu.dot_dimension_numbers<[1], [0], [0], [1], [0, 0, 1, 1], [], []>} : vector<8x128xf32>, vector<128x512xf32>, vector<8x512xf32> -> vector<8x512xf32>
    %18 = arith.addf %15, %17 : vector<8x512xf32>
    %19 = arith.negf %18 : vector<8x512xf32>
    %20 = math.exp %19 : vector<8x512xf32>
    %cst_17 = arith.constant 1.000000e+00 : f32
    %21 = vector.broadcast %cst_17 : f32 to vector<8x512xf32>
    %22 = arith.addf %21, %20 : vector<8x512xf32>
    %23 = arith.divf %21, %22 : vector<8x512xf32>
    %24 = vector.extract_strided_slice %23 {offsets = [0, 0], sizes = [8, 128], strides = [1, 1]} : vector<8x512xf32> to vector<8x128xf32>
    %25 = vector.extract_strided_slice %23 {offsets = [0, 128], sizes = [8, 128], strides = [1, 1]} : vector<8x512xf32> to vector<8x128xf32>
    %26 = vector.extract_strided_slice %23 {offsets = [0, 384], sizes = [8, 128], strides = [1, 1]} : vector<8x512xf32> to vector<8x128xf32>
    %27 = vector.extract_strided_slice %18 {offsets = [0, 256], sizes = [8, 128], strides = [1, 1]} : vector<8x512xf32> to vector<8x128xf32>
    %28 = math.tanh %27 : vector<8x128xf32>
    %29 = arith.mulf %25, %11 : vector<8x128xf32>
    %30 = arith.mulf %24, %28 : vector<8x128xf32>
    %31 = arith.addf %29, %30 : vector<8x128xf32>
    %32 = math.tanh %31 : vector<8x128xf32>
    %33 = arith.mulf %26, %32 : vector<8x128xf32>
    %c1_i32 = arith.constant 1 : i32
    %c8_i32_18 = arith.constant 8 : i32
    %34 = arith.muli %c1_i32, %c8_i32_18 : i32
    %35 = tpu.assume_multiple %34, 8 : i32
    %36 = arith.index_cast %35 : i32 to index
    %c0_19 = arith.constant 0 : index
    %37 = vector.load %arg8[%36, %c0_19] : memref<64x512xf32, #tpu.memory_space<vmem>>, vector<8x512xf32>
    %c0_20 = arith.constant 0 : index
    %c0_21 = arith.constant 0 : index
    %38 = vector.load %arg3[%c0_20, %c0_21] : memref<128x512xf32, #tpu.memory_space<vmem>>, vector<128x512xf32>
    %cst_22 = arith.constant dense<0.000000e+00> : vector<8x512xf32>
    %39 = tpu.matmul %33, %38, %cst_22 {dimension_numbers = #tpu.dot_dimension_numbers<[1], [0], [0], [1], [0, 0, 1, 1], [], []>} : vector<8x128xf32>, vector<128x512xf32>, vector<8x512xf32> -> vector<8x512xf32>
    %40 = arith.addf %37, %39 : vector<8x512xf32>
    %41 = arith.negf %40 : vector<8x512xf32>
    %42 = math.exp %41 : vector<8x512xf32>
    %cst_23 = arith.constant 1.000000e+00 : f32
    %43 = vector.broadcast %cst_23 : f32 to vector<8x512xf32>
    %44 = arith.addf %43, %42 : vector<8x512xf32>
    %45 = arith.divf %43, %44 : vector<8x512xf32>
    %46 = vector.extract_strided_slice %45 {offsets = [0, 0], sizes = [8, 128], strides = [1, 1]} : vector<8x512xf32> to vector<8x128xf32>
    %47 = vector.extract_strided_slice %45 {offsets = [0, 128], sizes = [8, 128], strides = [1, 1]} : vector<8x512xf32> to vector<8x128xf32>
    %48 = vector.extract_strided_slice %45 {offsets = [0, 384], sizes = [8, 128], strides = [1, 1]} : vector<8x512xf32> to vector<8x128xf32>
    %49 = vector.extract_strided_slice %40 {offsets = [0, 256], sizes = [8, 128], strides = [1, 1]} : vector<8x512xf32> to vector<8x128xf32>
    %50 = math.tanh %49 : vector<8x128xf32>
    %51 = arith.mulf %47, %31 : vector<8x128xf32>
    %52 = arith.mulf %46, %50 : vector<8x128xf32>
    %53 = arith.addf %51, %52 : vector<8x128xf32>
    %54 = math.tanh %53 : vector<8x128xf32>
    %55 = arith.mulf %48, %54 : vector<8x128xf32>
    %c2_i32 = arith.constant 2 : i32
    %c8_i32_24 = arith.constant 8 : i32
    %56 = arith.muli %c2_i32, %c8_i32_24 : i32
    %57 = tpu.assume_multiple %56, 8 : i32
    %58 = arith.index_cast %57 : i32 to index
    %c0_25 = arith.constant 0 : index
    %59 = vector.load %arg8[%58, %c0_25] : memref<64x512xf32, #tpu.memory_space<vmem>>, vector<8x512xf32>
    %c0_26 = arith.constant 0 : index
    %c0_27 = arith.constant 0 : index
    %60 = vector.load %arg3[%c0_26, %c0_27] : memref<128x512xf32, #tpu.memory_space<vmem>>, vector<128x512xf32>
    %cst_28 = arith.constant dense<0.000000e+00> : vector<8x512xf32>
    %61 = tpu.matmul %55, %60, %cst_28 {dimension_numbers = #tpu.dot_dimension_numbers<[1], [0], [0], [1], [0, 0, 1, 1], [], []>} : vector<8x128xf32>, vector<128x512xf32>, vector<8x512xf32> -> vector<8x512xf32>
    %62 = arith.addf %59, %61 : vector<8x512xf32>
    %63 = arith.negf %62 : vector<8x512xf32>
    %64 = math.exp %63 : vector<8x512xf32>
    %cst_29 = arith.constant 1.000000e+00 : f32
    %65 = vector.broadcast %cst_29 : f32 to vector<8x512xf32>
    %66 = arith.addf %65, %64 : vector<8x512xf32>
    %67 = arith.divf %65, %66 : vector<8x512xf32>
    %68 = vector.extract_strided_slice %67 {offsets = [0, 0], sizes = [8, 128], strides = [1, 1]} : vector<8x512xf32> to vector<8x128xf32>
    %69 = vector.extract_strided_slice %67 {offsets = [0, 128], sizes = [8, 128], strides = [1, 1]} : vector<8x512xf32> to vector<8x128xf32>
    %70 = vector.extract_strided_slice %67 {offsets = [0, 384], sizes = [8, 128], strides = [1, 1]} : vector<8x512xf32> to vector<8x128xf32>
    %71 = vector.extract_strided_slice %62 {offsets = [0, 256], sizes = [8, 128], strides = [1, 1]} : vector<8x512xf32> to vector<8x128xf32>
    %72 = math.tanh %71 : vector<8x128xf32>
    %73 = arith.mulf %69, %53 : vector<8x128xf32>
    %74 = arith.mulf %68, %72 : vector<8x128xf32>
    %75 = arith.addf %73, %74 : vector<8x128xf32>
    %76 = math.tanh %75 : vector<8x128xf32>
    %77 = arith.mulf %70, %76 : vector<8x128xf32>
    %c3_i32 = arith.constant 3 : i32
    %c8_i32_30 = arith.constant 8 : i32
    %78 = arith.muli %c3_i32, %c8_i32_30 : i32
    %79 = tpu.assume_multiple %78, 8 : i32
    %80 = arith.index_cast %79 : i32 to index
    %c0_31 = arith.constant 0 : index
    %81 = vector.load %arg8[%80, %c0_31] : memref<64x512xf32, #tpu.memory_space<vmem>>, vector<8x512xf32>
    %c0_32 = arith.constant 0 : index
    %c0_33 = arith.constant 0 : index
    %82 = vector.load %arg3[%c0_32, %c0_33] : memref<128x512xf32, #tpu.memory_space<vmem>>, vector<128x512xf32>
    %cst_34 = arith.constant dense<0.000000e+00> : vector<8x512xf32>
    %83 = tpu.matmul %77, %82, %cst_34 {dimension_numbers = #tpu.dot_dimension_numbers<[1], [0], [0], [1], [0, 0, 1, 1], [], []>} : vector<8x128xf32>, vector<128x512xf32>, vector<8x512xf32> -> vector<8x512xf32>
    %84 = arith.addf %81, %83 : vector<8x512xf32>
    %85 = arith.negf %84 : vector<8x512xf32>
    %86 = math.exp %85 : vector<8x512xf32>
    %cst_35 = arith.constant 1.000000e+00 : f32
    %87 = vector.broadcast %cst_35 : f32 to vector<8x512xf32>
    %88 = arith.addf %87, %86 : vector<8x512xf32>
    %89 = arith.divf %87, %88 : vector<8x512xf32>
    %90 = vector.extract_strided_slice %89 {offsets = [0, 0], sizes = [8, 128], strides = [1, 1]} : vector<8x512xf32> to vector<8x128xf32>
    %91 = vector.extract_strided_slice %89 {offsets = [0, 128], sizes = [8, 128], strides = [1, 1]} : vector<8x512xf32> to vector<8x128xf32>
    %92 = vector.extract_strided_slice %89 {offsets = [0, 384], sizes = [8, 128], strides = [1, 1]} : vector<8x512xf32> to vector<8x128xf32>
    %93 = vector.extract_strided_slice %84 {offsets = [0, 256], sizes = [8, 128], strides = [1, 1]} : vector<8x512xf32> to vector<8x128xf32>
    %94 = math.tanh %93 : vector<8x128xf32>
    %95 = arith.mulf %91, %75 : vector<8x128xf32>
    %96 = arith.mulf %90, %94 : vector<8x128xf32>
    %97 = arith.addf %95, %96 : vector<8x128xf32>
    %98 = math.tanh %97 : vector<8x128xf32>
    %99 = arith.mulf %92, %98 : vector<8x128xf32>
    %c4_i32 = arith.constant 4 : i32
    %c8_i32_36 = arith.constant 8 : i32
    %100 = arith.muli %c4_i32, %c8_i32_36 : i32
    %101 = tpu.assume_multiple %100, 8 : i32
    %102 = arith.index_cast %101 : i32 to index
    %c0_37 = arith.constant 0 : index
    %103 = vector.load %arg8[%102, %c0_37] : memref<64x512xf32, #tpu.memory_space<vmem>>, vector<8x512xf32>
    %c0_38 = arith.constant 0 : index
    %c0_39 = arith.constant 0 : index
    %104 = vector.load %arg3[%c0_38, %c0_39] : memref<128x512xf32, #tpu.memory_space<vmem>>, vector<128x512xf32>
    %cst_40 = arith.constant dense<0.000000e+00> : vector<8x512xf32>
    %105 = tpu.matmul %99, %104, %cst_40 {dimension_numbers = #tpu.dot_dimension_numbers<[1], [0], [0], [1], [0, 0, 1, 1], [], []>} : vector<8x128xf32>, vector<128x512xf32>, vector<8x512xf32> -> vector<8x512xf32>
    %106 = arith.addf %103, %105 : vector<8x512xf32>
    %107 = arith.negf %106 : vector<8x512xf32>
    %108 = math.exp %107 : vector<8x512xf32>
    %cst_41 = arith.constant 1.000000e+00 : f32
    %109 = vector.broadcast %cst_41 : f32 to vector<8x512xf32>
    %110 = arith.addf %109, %108 : vector<8x512xf32>
    %111 = arith.divf %109, %110 : vector<8x512xf32>
    %112 = vector.extract_strided_slice %111 {offsets = [0, 0], sizes = [8, 128], strides = [1, 1]} : vector<8x512xf32> to vector<8x128xf32>
    %113 = vector.extract_strided_slice %111 {offsets = [0, 128], sizes = [8, 128], strides = [1, 1]} : vector<8x512xf32> to vector<8x128xf32>
    %114 = vector.extract_strided_slice %111 {offsets = [0, 384], sizes = [8, 128], strides = [1, 1]} : vector<8x512xf32> to vector<8x128xf32>
    %115 = vector.extract_strided_slice %106 {offsets = [0, 256], sizes = [8, 128], strides = [1, 1]} : vector<8x512xf32> to vector<8x128xf32>
    %116 = math.tanh %115 : vector<8x128xf32>
    %117 = arith.mulf %113, %97 : vector<8x128xf32>
    %118 = arith.mulf %112, %116 : vector<8x128xf32>
    %119 = arith.addf %117, %118 : vector<8x128xf32>
    %120 = math.tanh %119 : vector<8x128xf32>
    %121 = arith.mulf %114, %120 : vector<8x128xf32>
    %c5_i32 = arith.constant 5 : i32
    %c8_i32_42 = arith.constant 8 : i32
    %122 = arith.muli %c5_i32, %c8_i32_42 : i32
    %123 = tpu.assume_multiple %122, 8 : i32
    %124 = arith.index_cast %123 : i32 to index
    %c0_43 = arith.constant 0 : index
    %125 = vector.load %arg8[%124, %c0_43] : memref<64x512xf32, #tpu.memory_space<vmem>>, vector<8x512xf32>
    %c0_44 = arith.constant 0 : index
    %c0_45 = arith.constant 0 : index
    %126 = vector.load %arg3[%c0_44, %c0_45] : memref<128x512xf32, #tpu.memory_space<vmem>>, vector<128x512xf32>
    %cst_46 = arith.constant dense<0.000000e+00> : vector<8x512xf32>
    %127 = tpu.matmul %121, %126, %cst_46 {dimension_numbers = #tpu.dot_dimension_numbers<[1], [0], [0], [1], [0, 0, 1, 1], [], []>} : vector<8x128xf32>, vector<128x512xf32>, vector<8x512xf32> -> vector<8x512xf32>
    %128 = arith.addf %125, %127 : vector<8x512xf32>
    %129 = arith.negf %128 : vector<8x512xf32>
    %130 = math.exp %129 : vector<8x512xf32>
    %cst_47 = arith.constant 1.000000e+00 : f32
    %131 = vector.broadcast %cst_47 : f32 to vector<8x512xf32>
    %132 = arith.addf %131, %130 : vector<8x512xf32>
    %133 = arith.divf %131, %132 : vector<8x512xf32>
    %134 = vector.extract_strided_slice %133 {offsets = [0, 0], sizes = [8, 128], strides = [1, 1]} : vector<8x512xf32> to vector<8x128xf32>
    %135 = vector.extract_strided_slice %133 {offsets = [0, 128], sizes = [8, 128], strides = [1, 1]} : vector<8x512xf32> to vector<8x128xf32>
    %136 = vector.extract_strided_slice %133 {offsets = [0, 384], sizes = [8, 128], strides = [1, 1]} : vector<8x512xf32> to vector<8x128xf32>
    %137 = vector.extract_strided_slice %128 {offsets = [0, 256], sizes = [8, 128], strides = [1, 1]} : vector<8x512xf32> to vector<8x128xf32>
    %138 = math.tanh %137 : vector<8x128xf32>
    %139 = arith.mulf %135, %119 : vector<8x128xf32>
    %140 = arith.mulf %134, %138 : vector<8x128xf32>
    %141 = arith.addf %139, %140 : vector<8x128xf32>
    %142 = math.tanh %141 : vector<8x128xf32>
    %143 = arith.mulf %136, %142 : vector<8x128xf32>
    %c6_i32 = arith.constant 6 : i32
    %c8_i32_48 = arith.constant 8 : i32
    %144 = arith.muli %c6_i32, %c8_i32_48 : i32
    %145 = tpu.assume_multiple %144, 8 : i32
    %146 = arith.index_cast %145 : i32 to index
    %c0_49 = arith.constant 0 : index
    %147 = vector.load %arg8[%146, %c0_49] : memref<64x512xf32, #tpu.memory_space<vmem>>, vector<8x512xf32>
    %c0_50 = arith.constant 0 : index
    %c0_51 = arith.constant 0 : index
    %148 = vector.load %arg3[%c0_50, %c0_51] : memref<128x512xf32, #tpu.memory_space<vmem>>, vector<128x512xf32>
    %cst_52 = arith.constant dense<0.000000e+00> : vector<8x512xf32>
    %149 = tpu.matmul %143, %148, %cst_52 {dimension_numbers = #tpu.dot_dimension_numbers<[1], [0], [0], [1], [0, 0, 1, 1], [], []>} : vector<8x128xf32>, vector<128x512xf32>, vector<8x512xf32> -> vector<8x512xf32>
    %150 = arith.addf %147, %149 : vector<8x512xf32>
    %151 = arith.negf %150 : vector<8x512xf32>
    %152 = math.exp %151 : vector<8x512xf32>
    %cst_53 = arith.constant 1.000000e+00 : f32
    %153 = vector.broadcast %cst_53 : f32 to vector<8x512xf32>
    %154 = arith.addf %153, %152 : vector<8x512xf32>
    %155 = arith.divf %153, %154 : vector<8x512xf32>
    %156 = vector.extract_strided_slice %155 {offsets = [0, 0], sizes = [8, 128], strides = [1, 1]} : vector<8x512xf32> to vector<8x128xf32>
    %157 = vector.extract_strided_slice %155 {offsets = [0, 128], sizes = [8, 128], strides = [1, 1]} : vector<8x512xf32> to vector<8x128xf32>
    %158 = vector.extract_strided_slice %155 {offsets = [0, 384], sizes = [8, 128], strides = [1, 1]} : vector<8x512xf32> to vector<8x128xf32>
    %159 = vector.extract_strided_slice %150 {offsets = [0, 256], sizes = [8, 128], strides = [1, 1]} : vector<8x512xf32> to vector<8x128xf32>
    %160 = math.tanh %159 : vector<8x128xf32>
    %161 = arith.mulf %157, %141 : vector<8x128xf32>
    %162 = arith.mulf %156, %160 : vector<8x128xf32>
    %163 = arith.addf %161, %162 : vector<8x128xf32>
    %164 = math.tanh %163 : vector<8x128xf32>
    %165 = arith.mulf %158, %164 : vector<8x128xf32>
    %c7_i32 = arith.constant 7 : i32
    %c8_i32_54 = arith.constant 8 : i32
    %166 = arith.muli %c7_i32, %c8_i32_54 : i32
    %167 = tpu.assume_multiple %166, 8 : i32
    %168 = arith.index_cast %167 : i32 to index
    %c0_55 = arith.constant 0 : index
    %169 = vector.load %arg8[%168, %c0_55] : memref<64x512xf32, #tpu.memory_space<vmem>>, vector<8x512xf32>
    %c0_56 = arith.constant 0 : index
    %c0_57 = arith.constant 0 : index
    %170 = vector.load %arg3[%c0_56, %c0_57] : memref<128x512xf32, #tpu.memory_space<vmem>>, vector<128x512xf32>
    %cst_58 = arith.constant dense<0.000000e+00> : vector<8x512xf32>
    %171 = tpu.matmul %165, %170, %cst_58 {dimension_numbers = #tpu.dot_dimension_numbers<[1], [0], [0], [1], [0, 0, 1, 1], [], []>} : vector<8x128xf32>, vector<128x512xf32>, vector<8x512xf32> -> vector<8x512xf32>
    %172 = arith.addf %169, %171 : vector<8x512xf32>
    %173 = arith.negf %172 : vector<8x512xf32>
    %174 = math.exp %173 : vector<8x512xf32>
    %cst_59 = arith.constant 1.000000e+00 : f32
    %175 = vector.broadcast %cst_59 : f32 to vector<8x512xf32>
    %176 = arith.addf %175, %174 : vector<8x512xf32>
    %177 = arith.divf %175, %176 : vector<8x512xf32>
    %178 = vector.extract_strided_slice %177 {offsets = [0, 0], sizes = [8, 128], strides = [1, 1]} : vector<8x512xf32> to vector<8x128xf32>
    %179 = vector.extract_strided_slice %177 {offsets = [0, 128], sizes = [8, 128], strides = [1, 1]} : vector<8x512xf32> to vector<8x128xf32>
    %180 = vector.extract_strided_slice %177 {offsets = [0, 384], sizes = [8, 128], strides = [1, 1]} : vector<8x512xf32> to vector<8x128xf32>
    %181 = vector.extract_strided_slice %172 {offsets = [0, 256], sizes = [8, 128], strides = [1, 1]} : vector<8x512xf32> to vector<8x128xf32>
    %182 = math.tanh %181 : vector<8x128xf32>
    %183 = arith.mulf %179, %163 : vector<8x128xf32>
    %184 = arith.mulf %178, %182 : vector<8x128xf32>
    %185 = arith.addf %183, %184 : vector<8x128xf32>
    %186 = math.tanh %185 : vector<8x128xf32>
    %187 = arith.mulf %180, %186 : vector<8x128xf32>
    %c8_i32_60 = arith.constant 8 : i32
    %c0_61 = arith.constant 0 : index
    %c0_62 = arith.constant 0 : index
    %188 = vector.load %arg9[%c0_61, %c0_62] : memref<8x128xf32, #tpu.memory_space<vmem>>, vector<8x128xf32>
    tpu.vector_store %arg9[%c0_61, %c0_62], %187 {strides = array<i32>} : memref<8x128xf32, #tpu.memory_space<vmem>>, vector<8x128xf32>,
    %c0_63 = arith.constant 0 : index
    %c0_64 = arith.constant 0 : index
    %189 = vector.load %arg10[%c0_63, %c0_64] : memref<8x128xf32, #tpu.memory_space<vmem>>, vector<8x128xf32>
    tpu.vector_store %arg10[%c0_63, %c0_64], %185 {strides = array<i32>} : memref<8x128xf32, #tpu.memory_space<vmem>>, vector<8x128xf32>,
    %c0_i32_65 = arith.constant 0 : i32
    %190 = arith.cmpi eq, %arg0, %c0_i32_65 : i32
    %191 = arith.extui %190 : i1 to i32
    %c0_i32_66 = arith.constant 0 : i32
    %192 = arith.cmpi ne, %191, %c0_i32_66 : i32
    scf.if %192 {
      %c0_67 = arith.constant 0 : index
      %c0_68 = arith.constant 0 : index
      %193 = vector.load %arg5[%c0_67, %c0_68] : memref<128x128xf32, #tpu.memory_space<vmem>>, vector<128x128xf32>
      %cst_69 = arith.constant dense<0.000000e+00> : vector<8x128xf32>
      %194 = tpu.matmul %187, %193, %cst_69 {dimension_numbers = #tpu.dot_dimension_numbers<[1], [0], [0], [1], [0, 0, 1, 1], [], []>} : vector<8x128xf32>, vector<128x128xf32>, vector<8x128xf32> -> vector<8x128xf32>
      %c0_70 = arith.constant 0 : index
      %c0_71 = arith.constant 0 : index
      %195 = vector.load %arg6[%c0_70, %c0_71] : memref<1x128xf32, #tpu.memory_space<vmem>>, vector<1x128xf32>
      %196 = vector.broadcast %195 : vector<1x128xf32> to vector<8x128xf32>
      %197 = arith.addf %194, %196 : vector<8x128xf32>
      %c0_72 = arith.constant 0 : index
      %c0_73 = arith.constant 0 : index
      %198 = vector.load %arg7[%c0_72, %c0_73] : memref<8x128xf32, #tpu.memory_space<vmem>>, vector<8x128xf32>
      tpu.vector_store %arg7[%c0_72, %c0_73], %197 {strides = array<i32>} : memref<8x128xf32, #tpu.memory_space<vmem>>, vector<8x128xf32>,
    } else {
    }
    return
  }
  func.func @transform_0(%arg0: i32) -> (i32, i32) {
    %c0_i32 = arith.constant 0 : i32
    %c0_i32_0 = arith.constant 0 : i32
    return %arg0, %c0_i32 : i32, i32
  }
  func.func @transform_1(%arg0: i32) -> (i32, i32) {
    %c0_i32 = arith.constant 0 : i32
    %c0_i32_0 = arith.constant 0 : i32
    %c0_i32_1 = arith.constant 0 : i32
    return %c0_i32, %c0_i32_0 : i32, i32
  }
  func.func @transform_2(%arg0: i32) -> (i32, i32) {
    %c0_i32 = arith.constant 0 : i32
    %c0_i32_0 = arith.constant 0 : i32
    %c0_i32_1 = arith.constant 0 : i32
    return %c0_i32, %c0_i32_0 : i32, i32
  }
  func.func @transform_3(%arg0: i32) -> (i32, i32) {
    %c0_i32 = arith.constant 0 : i32
    %c0_i32_0 = arith.constant 0 : i32
    %c0_i32_1 = arith.constant 0 : i32
    return %c0_i32, %c0_i32_0 : i32, i32
  }
  func.func @transform_4(%arg0: i32) -> (i32, i32) {
    %c0_i32 = arith.constant 0 : i32
    %c0_i32_0 = arith.constant 0 : i32
    %c0_i32_1 = arith.constant 0 : i32
    return %c0_i32, %c0_i32_0 : i32, i32
  }
  func.func @transform_5(%arg0: i32) -> (i32, i32) {
    %c0_i32 = arith.constant 0 : i32
    %c0_i32_0 = arith.constant 0 : i32
    %c0_i32_1 = arith.constant 0 : i32
    return %c0_i32, %c0_i32_0 : i32, i32
  }
  func.func @transform_6(%arg0: i32) -> (i32, i32) {
    %c0_i32 = arith.constant 0 : i32
    %c0_i32_0 = arith.constant 0 : i32
    %c0_i32_1 = arith.constant 0 : i32
    return %c0_i32, %c0_i32_0 : i32, i32
  }
}

</mosaic_0001>

<llo_original>
// kernel: tpu_custom_call.1
$region0: #{tpu_custom_call.1}
  #allocation0 [shape = 'u32[]', space=smem, size = 0x4, offset = 0x4, fixed_abs, tag = 'smem constant byte address 0x4 - core index']
  #allocation1 [shape = 'u32[72,128]{1,0:T(1,128)}', space=vmem, size = 0x9000, scoped, tag = 'internal scratch']
  #allocation2 [shape = 'f32[64,512]{1,0:T(8,128)}', space=vmem, size = 0x20000, scoped, tag = 'scratch operand']
  #allocation3 [shape = 'f32[8,128]{1,0:T(8,128)}', space=vmem, size = 0x1000, scoped, tag = 'scratch operand']
  #allocation4 [shape = 'f32[8,128]{1,0:T(8,128)}', space=vmem, size = 0x1000, scoped, tag = 'scratch operand']
  %s0 = inlined_call_operand.hbm [shape: f32[64,128], index: 0, kind: input, shape index: {}]
  %s1 = inlined_call_operand.hbm [shape: f32[128,512], index: 1, kind: input, shape index: {}]
  %s2 = inlined_call_operand.hbm [shape: f32[128,512], index: 2, kind: input, shape index: {}]
  %s3 = inlined_call_operand.hbm [shape: f32[1,512], index: 3, kind: input, shape index: {}]
  %s4 = inlined_call_operand.hbm [shape: f32[128,128], index: 4, kind: input, shape index: {}]
  %s5 = inlined_call_operand.vmem [shape: f32[1,128], index: 5, kind: input, shape index: {}]
  %s6 = inlined_call_operand.hbm [shape: f32[8,128], index: 6, kind: output, shape index: {}]
  %s7 = sld [smem:[#allocation0]]
  $region62: #{tpu_custom_call.1} parent=0
    _
  %s9 = ssub.s32 1, %s7
  %s10 = scalar_select 0, %s9, %s7
  $region1: #{tpu_custom_call.1} parent=0
    #allocation5 [shape = 'u8[32768]{0}', space=vmem, size = 0x8000, scoped, tag = 'input window, operand 0, single buffered']
    #allocation6 [shape = 's32[1]{0}', space=sflag, size = 0x4, scoped, tag = 'scoped memory for tpu_custom_call.1']
    #allocation7 [shape = 's32[1]{0}', space=sflag, size = 0x4, scoped, tag = 'scoped memory for tpu_custom_call.1']
    #allocation8 [shape = 'u8[262144]{0}', space=vmem, size = 0x40000, scoped, tag = 'input window, operand 1, single buffered']
    #allocation9 [shape = 's32[1]{0}', space=sflag, size = 0x4, scoped, tag = 'scoped memory for tpu_custom_call.1']
    #allocation10 [shape = 'u8[262144]{0}', space=vmem, size = 0x40000, scoped, tag = 'input window, operand 2, single buffered']
    #allocation11 [shape = 'u8[2048]{0}', space=vmem, size = 0x800, scoped, tag = 'input window, operand 3, single buffered']
    #allocation12 [shape = 's32[1]{0}', space=sflag, size = 0x4, scoped, tag = 'scoped memory for tpu_custom_call.1']
    #allocation13 [shape = 'u8[65536]{0}', space=vmem, size = 0x10000, scoped, tag = 'input window, operand 4, single buffered']
    #allocation14 [shape = 'u8[4096]{0}', space=vmem, size = 0x1000, scoped, tag = 'output window, operand 0, single buffered']
    %11 = vsyncpa [#allocation6], 0
    %12 = vsyncpa [#allocation9], 0
    %13 = vsyncpa [#allocation12], 0
    %14 = vsyncpa [#allocation7], 0
    // Predicated region
    $region2: #{tpu_custom_call.1} parent=1 // pred_check
      _
    $region3: #{tpu_custom_call.1} parent=1 // pred_check_branch
      %16 = sbr.rel (0) target = $region5
    $region4: #{tpu_custom_call.1} parent=1 // pred_region
      %18 = vsyncadd [#allocation6], 0
      %s19 = sshll.u32 %s0, 4
      %s20 = int_to_ptr.hbm [resolvable:$true] %s19
      %s21 = sshll.u32 [#allocation5], 4
      %s22 = int_to_ptr.vmem [resolvable:$true] %s21
      %27 = dma.hbm_to_vmem [thread:$0]  %s20, 1024, %s22, [#allocation6], 128, 128, 8
    $region5: #{tpu_custom_call.1} parent=1 // pred_fallthru
      _
    // Predicated region
    $region6: #{tpu_custom_call.1} parent=1 // pred_check
      _
    $region7: #{tpu_custom_call.1} parent=1 // pred_check_branch
      %29 = sbr.rel (0) target = $region9
    $region8: #{tpu_custom_call.1} parent=1 // pred_region
      %31 = vsyncadd [#allocation9], 0
      %s32 = sshll.u32 %s1, 4
      %s33 = int_to_ptr.hbm [resolvable:$true] %s32
      %s34 = sshll.u32 [#allocation8], 4
      %s35 = int_to_ptr.vmem [resolvable:$true] %s34
      %40 = dma.hbm_to_vmem [thread:$0]  %s33, 8192, %s35, [#allocation9], 512, 512, 32
    $region9: #{tpu_custom_call.1} parent=1 // pred_fallthru
      _
    // Predicated region
    $region10: #{tpu_custom_call.1} parent=1 // pred_check
      _
    $region11: #{tpu_custom_call.1} parent=1 // pred_check_branch
      %42 = sbr.rel (0) target = $region13
    $region12: #{tpu_custom_call.1} parent=1 // pred_region
      %44 = vsyncadd [#allocation9], 0
      %s45 = sshll.u32 %s2, 4
      %s46 = int_to_ptr.hbm [resolvable:$true] %s45
      %s47 = sshll.u32 [#allocation10], 4
      %s48 = int_to_ptr.vmem [resolvable:$true] %s47
      %53 = dma.hbm_to_vmem [thread:$0]  %s46, 8192, %s48, [#allocation9], 512, 512, 32
    $region13: #{tpu_custom_call.1} parent=1 // pred_fallthru
      _
    // Predicated region
    $region14: #{tpu_custom_call.1} parent=1 // pred_check
      _
    $region15: #{tpu_custom_call.1} parent=1 // pred_check_branch
      %55 = sbr.rel (0) target = $region17
    $region16: #{tpu_custom_call.1} parent=1 // pred_region
      %57 = vsyncadd [#allocation12], 0
      %s59 = sshll.u32 %s3, 4
      %s60 = int_to_ptr.hbm [resolvable:$true] %s59
      %s61 = sshll.u32 [#allocation11], 4
      %s62 = int_to_ptr.vmem [resolvable:$true] %s61
      %64 = dma.hbm_to_vmem [thread:$0]  %s60, 64, %s62, [#allocation12]
    $region17: #{tpu_custom_call.1} parent=1 // pred_fallthru
      _
    // Predicated region
    $region18: #{tpu_custom_call.1} parent=1 // pred_check
      _
    $region19: #{tpu_custom_call.1} parent=1 // pred_check_branch
      %66 = sbr.rel (0) target = $region21
    $region20: #{tpu_custom_call.1} parent=1 // pred_region
      %68 = vsyncadd [#allocation12], 0
      %s69 = sshll.u32 %s4, 4
      %s70 = int_to_ptr.hbm [resolvable:$true] %s69
      %s71 = sshll.u32 [#allocation13], 4
      %s72 = int_to_ptr.vmem [resolvable:$true] %s71
      %77 = dma.hbm_to_vmem [thread:$0]  %s70, 2048, %s72, [#allocation12], 128, 128, 8
    $region21: #{tpu_custom_call.1} parent=1 // pred_fallthru
      _
    // Predicated region
    $region22: #{tpu_custom_call.1} parent=1 // pred_check
      _
    $region23: #{tpu_custom_call.1} parent=1 // pred_check_branch
      %79 = sbr.rel (0) target = $region25
    $region24: #{tpu_custom_call.1} parent=1 // pred_region
      _
    $region25: #{tpu_custom_call.1} parent=1 // pred_fallthru
      _
    // Predicated region
    $region26: #{tpu_custom_call.1} parent=1 // pred_check
      _
    $region27: #{tpu_custom_call.1} parent=1 // pred_check_branch
      %81 = sbr.rel (0) target = $region29
    $region28: #{tpu_custom_call.1} parent=1 // pred_region
      %83 = dma.done [#allocation6], 1024
    $region29: #{tpu_custom_call.1} parent=1 // pred_fallthru
      _
    // Predicated region
    $region30: #{tpu_custom_call.1} parent=1 // pred_check
      _
    $region31: #{tpu_custom_call.1} parent=1 // pred_check_branch
      %85 = sbr.rel (0) target = $region33
    $region32: #{tpu_custom_call.1} parent=1 // pred_region
      %87 = dma.done [#allocation9], 8192
    $region33: #{tpu_custom_call.1} parent=1 // pred_fallthru
      _
    // Predicated region
    $region34: #{tpu_custom_call.1} parent=1 // pred_check
      _
    $region35: #{tpu_custom_call.1} parent=1 // pred_check_branch
      %89 = sbr.rel (0) target = $region37
    $region36: #{tpu_custom_call.1} parent=1 // pred_region
      %91 = dma.done [#allocation9], 8192
    $region37: #{tpu_custom_call.1} parent=1 // pred_fallthru
      _
    // Predicated region
    $region38: #{tpu_custom_call.1} parent=1 // pred_check
      _
    $region39: #{tpu_custom_call.1} parent=1 // pred_check_branch
      %93 = sbr.rel (0) target = $region41
    $region40: #{tpu_custom_call.1} parent=1 // pred_region
      %95 = dma.done [#allocation12], 64
    $region41: #{tpu_custom_call.1} parent=1 // pred_fallthru
      _
    // Predicated region
    $region42: #{tpu_custom_call.1} parent=1 // pred_check
      _
    $region43: #{tpu_custom_call.1} parent=1 // pred_check_branch
      %97 = sbr.rel (0) target = $region45
    $region44: #{tpu_custom_call.1} parent=1 // pred_region
      %99 = dma.done [#allocation12], 2048
    $region45: #{tpu_custom_call.1} parent=1 // pred_fallthru
      _
    %p100 = scmp.eq.s32.totalorder 0, 0
    // Predicated region
    $region46: #{tpu_custom_call.1} parent=1 // pred_check
      %p101 = pneg %p100
    $region47: #{tpu_custom_call.1} parent=1 // pred_check_branch
      %103 = sbr.rel (%p101) target = $region49
    $region48: #{tpu_custom_call.1} parent=1 // pred_region
      %104 = vst [vmem:[#allocation3] sm:$0xff] 0.0
      %105 = vst [vmem:[#allocation4] sm:$0xff] 0.0
    $region49: #{tpu_custom_call.1} parent=1 // pred_fallthru
      _
    %v106 = vld [vmem:[#allocation5] sm:$0xff]
    %v107 = vld [vmem:[#allocation5 + $0x8] sm:$0xff]
    %v108 = vld [vmem:[#allocation5 + $0x10] sm:$0xff]
    %v109 = vld [vmem:[#allocation5 + $0x18] sm:$0xff]
    %v110 = vld [vmem:[#allocation5 + $0x20] sm:$0xff]
    %v111 = vld [vmem:[#allocation5 + $0x28] sm:$0xff]
    %v112 = vld [vmem:[#allocation5 + $0x30] sm:$0xff]
    %v113 = vld [vmem:[#allocation5 + $0x38] sm:$0xff]
    %v114 = vld [vmem:[#allocation8] sm:$0xff]
    %v115 = vld [vmem:[#allocation8 + $0x8] sm:$0xff]
    %v116 = vld [vmem:[#allocation8 + $0x10] sm:$0xff]
    %v117 = vld [vmem:[#allocation8 + $0x18] sm:$0xff]
    %v118 = vld [vmem:[#allocation8 + $0x20] sm:$0xff]
    %v119 = vld [vmem:[#allocation8 + $0x28] sm:$0xff]
    %v120 = vld [vmem:[#allocation8 + $0x30] sm:$0xff]
    %v121 = vld [vmem:[#allocation8 + $0x38] sm:$0xff]
    %v122 = vld [vmem:[#allocation8 + $0x40] sm:$0xff]
    %v123 = vld [vmem:[#allocation8 + $0x48] sm:$0xff]
    %v124 = vld [vmem:[#allocation8 + $0x50] sm:$0xff]
    %v125 = vld [vmem:[#allocation8 + $0x58] sm:$0xff]
    %v126 = vld [vmem:[#allocation8 + $0x60] sm:$0xff]
    %v127 = vld [vmem:[#allocation8 + $0x68] sm:$0xff]
    %v128 = vld [vmem:[#allocation8 + $0x70] sm:$0xff]
    %v129 = vld [vmem:[#allocation8 + $0x78] sm:$0xff]
    %v130 = vld [vmem:[#allocation8 + $0x80] sm:$0xff]
    %v131 = vld [vmem:[#allocation8 + $0x88] sm:$0xff]
    %v132 = vld [vmem:[#allocation8 + $0x90] sm:$0xff]
    %v133 = vld [vmem:[#allocation8 + $0x98] sm:$0xff]
    %v134 = vld [vmem:[#allocation8 + $0xa0] sm:$0xff]
    %v135 = vld [vmem:[#allocation8 + $0xa8] sm:$0xff]
    %v136 = vld [vmem:[#allocation8 + $0xb0] sm:$0xff]
    %v137 = vld [vmem:[#allocation8 + $0xb8] sm:$0xff]
    %v138 = vld [vmem:[#allocation8 + $0xc0] sm:$0xff]
    %v139 = vld [vmem:[#allocation8 + $0xc8] sm:$0xff]
    %v140 = vld [vmem:[#allocation8 + $0xd0] sm:$0xff]
    %v141 = vld [vmem:[#allocation8 + $0xd8] sm:$0xff]
    %v142 = vld [vmem:[#allocation8 + $0xe0] sm:$0xff]
    %v143 = vld [vmem:[#allocation8 + $0xe8] sm:$0xff]
    %v144 = vld [vmem:[#allocation8 + $0xf0] sm:$0xff]
    %v145 = vld [vmem:[#allocation8 + $0xf8] sm:$0xff]
    %v146 = vld [vmem:[#allocation8 + $0x100] sm:$0xff]
    %v147 = vld [vmem:[#allocation8 + $0x108] sm:$0xff]
    %v148 = vld [vmem:[#allocation8 + $0x110] sm:$0xff]
    %v149 = vld [vmem:[#allocation8 + $0x118] sm:$0xff]
    %v150 = vld [vmem:[#allocation8 + $0x120] sm:$0xff]
    %v151 = vld [vmem:[#allocation8 + $0x128] sm:$0xff]
    %v152 = vld [vmem:[#allocation8 + $0x130] sm:$0xff]
    %v153 = vld [vmem:[#allocation8 + $0x138] sm:$0xff]
    %v154 = vld [vmem:[#allocation8 + $0x140] sm:$0xff]
    %v155 = vld [vmem:[#allocation8 + $0x148] sm:$0xff]
    %v156 = vld [vmem:[#allocation8 + $0x150] sm:$0xff]
    %v157 = vld [vmem:[#allocation8 + $0x158] sm:$0xff]
    %v158 = vld [vmem:[#allocation8 + $0x160] sm:$0xff]
    %v159 = vld [vmem:[#allocation8 + $0x168] sm:$0xff]
    %v160 = vld [vmem:[#allocation8 + $0x170] sm:$0xff]
    %v161 = vld [vmem:[#allocation8 + $0x178] sm:$0xff]
    %v162 = vld [vmem:[#allocation8 + $0x180] sm:$0xff]
    %v163 = vld [vmem:[#allocation8 + $0x188] sm:$0xff]
    %v164 = vld [vmem:[#allocation8 + $0x190] sm:$0xff]
    %v165 = vld [vmem:[#allocation8 + $0x198] sm:$0xff]
    %v166 = vld [vmem:[#allocation8 + $0x1a0] sm:$0xff]
    %v167 = vld [vmem:[#allocation8 + $0x1a8] sm:$0xff]
    %v168 = vld [vmem:[#allocation8 + $0x1b0] sm:$0xff]
    %v169 = vld [vmem:[#allocation8 + $0x1b8] sm:$0xff]
    %v170 = vld [vmem:[#allocation8 + $0x1c0] sm:$0xff]
    %v171 = vld [vmem:[#allocation8 + $0x1c8] sm:$0xff]
    %v172 = vld [vmem:[#allocation8 + $0x1d0] sm:$0xff]
    %v173 = vld [vmem:[#allocation8 + $0x1d8] sm:$0xff]
    %v174 = vld [vmem:[#allocation8 + $0x1e0] sm:$0xff]
    %v175 = vld [vmem:[#allocation8 + $0x1e8] sm:$0xff]
    %v176 = vld [vmem:[#allocation8 + $0x1f0] sm:$0xff]
    %v177 = vld [vmem:[#allocation8 + $0x1f8] sm:$0xff]
    %v178 = vld [vmem:[#allocation11] sm:$0xf]
    %v180 = vperm.slane %v178, 0
    %v181 = vperm.slane %v178, 1
    %v182 = vperm.slane %v178, 2
    %v183 = vperm.slane %v178, 3
    %188 = vmatpush.msra.mxu0 %v174
    %189 = vmatpush.msra.mxu0 %v170
    %190 = vmatpush.msra.mxu0 %v166
    %191 = vmatpush.msra.mxu0 %v162
    %192 = vmatpush.msra.mxu0 %v158
    %193 = vmatpush.msra.mxu0 %v154
    %194 = vmatpush.msra.mxu0 %v150
    %195 = vmatpush.msra.mxu0 %v146
    %196 = vmatpush.msra.mxu0 %v142
    %197 = vmatpush.msra.mxu0 %v138
    %198 = vmatpush.msra.mxu0 %v134
    %199 = vmatpush.msra.mxu0 %v130
    %200 = vmatpush.msra.mxu0 %v126
    %201 = vmatpush.msra.mxu0 %v122
    %202 = vmatpush.msra.mxu0 %v118
    %203 = vmatpush.msra.mxu0 %v114
    %204 = vmatmul.f32.gmra.mxu0 %v106
    %v205 = vpop.f32.mrf.mxu0
    %v206 = vadd.f32 %v180, %v205
    %207 = vmatmul.f32.gmra.mxu0 %v107
    %v208 = vpop.f32.mrf.mxu0
    %v209 = vadd.f32 %v180, %v208
    %210 = vmatmul.f32.gmra.mxu0 %v108
    %v211 = vpop.f32.mrf.mxu0
    %v212 = vadd.f32 %v180, %v211
    %213 = vmatmul.f32.gmra.mxu0 %v109
    %v214 = vpop.f32.mrf.mxu0
    %v215 = vadd.f32 %v180, %v214
    %216 = vmatmul.f32.gmra.mxu0 %v110
    %v217 = vpop.f32.mrf.mxu0
    %v218 = vadd.f32 %v180, %v217
    %219 = vmatmul.f32.gmra.mxu0 %v111
    %v220 = vpop.f32.mrf.mxu0
    %v221 = vadd.f32 %v180, %v220
    %222 = vmatmul.f32.gmra.mxu0 %v112
    %v223 = vpop.f32.mrf.mxu0
    %v224 = vadd.f32 %v180, %v223
    %225 = vmatmul.f32.gmra.mxu0 %v113
    %v226 = vpop.f32.mrf.mxu0
    %v227 = vadd.f32 %v180, %v226
    %228 = vdwg.mxu0
    %229 = vmatpush.msra.mxu0 %v175
    %230 = vmatpush.msra.mxu0 %v171
    %231 = vmatpush.msra.mxu0 %v167
    %232 = vmatpush.msra.mxu0 %v163
    %233 = vmatpush.msra.mxu0 %v159
    %234 = vmatpush.msra.mxu0 %v155
    %235 = vmatpush.msra.mxu0 %v151
    %236 = vmatpush.msra.mxu0 %v147
    %237 = vmatpush.msra.mxu0 %v143
    %238 = vmatpush.msra.mxu0 %v139
    %239 = vmatpush.msra.mxu0 %v135
    %240 = vmatpush.msra.mxu0 %v131
    %241 = vmatpush.msra.mxu0 %v127
    %242 = vmatpush.msra.mxu0 %v123
    %243 = vmatpush.msra.mxu0 %v119
    %244 = vmatpush.msra.mxu0 %v115
    %245 = vmatmul.f32.gmra.mxu0 %v106
    %v246 = vpop.f32.mrf.mxu0
    %v247 = vadd.f32 %v181, %v246
    %248 = vmatmul.f32.gmra.mxu0 %v107
    %v249 = vpop.f32.mrf.mxu0
    %v250 = vadd.f32 %v181, %v249
    %251 = vmatmul.f32.gmra.mxu0 %v108
    %v252 = vpop.f32.mrf.mxu0
    %v253 = vadd.f32 %v181, %v252
    %254 = vmatmul.f32.gmra.mxu0 %v109
    %v255 = vpop.f32.mrf.mxu0
    %v256 = vadd.f32 %v181, %v255
    %257 = vmatmul.f32.gmra.mxu0 %v110
    %v258 = vpop.f32.mrf.mxu0
    %v259 = vadd.f32 %v181, %v258
    %260 = vmatmul.f32.gmra.mxu0 %v111
    %v261 = vpop.f32.mrf.mxu0
    %v262 = vadd.f32 %v181, %v261
    %263 = vmatmul.f32.gmra.mxu0 %v112
    %v264 = vpop.f32.mrf.mxu0
    %v265 = vadd.f32 %v181, %v264
    %266 = vmatmul.f32.gmra.mxu0 %v113
    %v267 = vpop.f32.mrf.mxu0
    %v268 = vadd.f32 %v181, %v267
    %269 = vdwg.mxu0
    %270 = vmatpush.msra.mxu0 %v176
    %271 = vmatpush.msra.mxu0 %v172
    %272 = vmatpush.msra.mxu0 %v168
    %273 = vmatpush.msra.mxu0 %v164
    %274 = vmatpush.msra.mxu0 %v160
    %275 = vmatpush.msra.mxu0 %v156
    %276 = vmatpush.msra.mxu0 %v152
    %277 = vmatpush.msra.mxu0 %v148
    %278 = vmatpush.msra.mxu0 %v144
    %279 = vmatpush.msra.mxu0 %v140
    %280 = vmatpush.msra.mxu0 %v136
    %281 = vmatpush.msra.mxu0 %v132
    %282 = vmatpush.msra.mxu0 %v128
    %283 = vmatpush.msra.mxu0 %v124
    %284 = vmatpush.msra.mxu0 %v120
    %285 = vmatpush.msra.mxu0 %v116
    %286 = vmatmul.f32.gmra.mxu0 %v106
    %v287 = vpop.f32.mrf.mxu0
    %v288 = vadd.f32 %v182, %v287
    %289 = vmatmul.f32.gmra.mxu0 %v107
    %v290 = vpop.f32.mrf.mxu0
    %v291 = vadd.f32 %v182, %v290
    %292 = vmatmul.f32.gmra.mxu0 %v108
    %v293 = vpop.f32.mrf.mxu0
    %v294 = vadd.f32 %v182, %v293
    %295 = vmatmul.f32.gmra.mxu0 %v109
    %v296 = vpop.f32.mrf.mxu0
    %v297 = vadd.f32 %v182, %v296
    %298 = vmatmul.f32.gmra.mxu0 %v110
    %v299 = vpop.f32.mrf.mxu0
    %v300 = vadd.f32 %v182, %v299
    %301 = vmatmul.f32.gmra.mxu0 %v111
    %v302 = vpop.f32.mrf.mxu0
    %v303 = vadd.f32 %v182, %v302
    %304 = vmatmul.f32.gmra.mxu0 %v112
    %v305 = vpop.f32.mrf.mxu0
    %v306 = vadd.f32 %v182, %v305
    %307 = vmatmul.f32.gmra.mxu0 %v113
    %v308 = vpop.f32.mrf.mxu0
    %v309 = vadd.f32 %v182, %v308
    %310 = vdwg.mxu0
    %311 = vmatpush.msra.mxu0 %v177
    %312 = vmatpush.msra.mxu0 %v173
    %313 = vmatpush.msra.mxu0 %v169
    %314 = vmatpush.msra.mxu0 %v165
    %315 = vmatpush.msra.mxu0 %v161
    %316 = vmatpush.msra.mxu0 %v157
    %317 = vmatpush.msra.mxu0 %v153
    %318 = vmatpush.msra.mxu0 %v149
    %319 = vmatpush.msra.mxu0 %v145
    %320 = vmatpush.msra.mxu0 %v141
    %321 = vmatpush.msra.mxu0 %v137
    %322 = vmatpush.msra.mxu0 %v133
    %323 = vmatpush.msra.mxu0 %v129
    %324 = vmatpush.msra.mxu0 %v125
    %325 = vmatpush.msra.mxu0 %v121
    %326 = vmatpush.msra.mxu0 %v117
    %327 = vmatmul.f32.gmra.mxu0 %v106
    %v328 = vpop.f32.mrf.mxu0
    %v329 = vadd.f32 %v183, %v328
    %330 = vmatmul.f32.gmra.mxu0 %v107
    %v331 = vpop.f32.mrf.mxu0
    %v332 = vadd.f32 %v183, %v331
    %333 = vmatmul.f32.gmra.mxu0 %v108
    %v334 = vpop.f32.mrf.mxu0
    %v335 = vadd.f32 %v183, %v334
    %336 = vmatmul.f32.gmra.mxu0 %v109
    %v337 = vpop.f32.mrf.mxu0
    %v338 = vadd.f32 %v183, %v337
    %339 = vmatmul.f32.gmra.mxu0 %v110
    %v340 = vpop.f32.mrf.mxu0
    %v341 = vadd.f32 %v183, %v340
    %342 = vmatmul.f32.gmra.mxu0 %v111
    %v343 = vpop.f32.mrf.mxu0
    %v344 = vadd.f32 %v183, %v343
    %345 = vmatmul.f32.gmra.mxu0 %v112
    %v346 = vpop.f32.mrf.mxu0
    %v347 = vadd.f32 %v183, %v346
    %348 = vmatmul.f32.gmra.mxu0 %v113
    %v349 = vpop.f32.mrf.mxu0
    %v350 = vadd.f32 %v183, %v349
    %351 = vdwg.mxu0
    %352 = vst [vmem:[#allocation2] sm:$0xff] %v206
    %353 = vst [vmem:[#allocation2 + $0x8] sm:$0xff] %v247
    %354 = vst [vmem:[#allocation2 + $0x10] sm:$0xff] %v288
    %355 = vst [vmem:[#allocation2 + $0x18] sm:$0xff] %v329
    %356 = vst [vmem:[#allocation2 + $0x20] sm:$0xff] %v209
    %357 = vst [vmem:[#allocation2 + $0x28] sm:$0xff] %v250
    %358 = vst [vmem:[#allocation2 + $0x30] sm:$0xff] %v291
    %359 = vst [vmem:[#allocation2 + $0x38] sm:$0xff] %v332
    %360 = vst [vmem:[#allocation2 + $0x40] sm:$0xff] %v212
    %361 = vst [vmem:[#allocation2 + $0x48] sm:$0xff] %v253
    %362 = vst [vmem:[#allocation2 + $0x50] sm:$0xff] %v294
    %363 = vst [vmem:[#allocation2 + $0x58] sm:$0xff] %v335
    %364 = vst [vmem:[#allocation2 + $0x60] sm:$0xff] %v215
    %365 = vst [vmem:[#allocation2 + $0x68] sm:$0xff] %v256
    %366 = vst [vmem:[#allocation2 + $0x70] sm:$0xff] %v297
    %367 = vst [vmem:[#allocation2 + $0x78] sm:$0xff] %v338
    %368 = vst [vmem:[#allocation2 + $0x80] sm:$0xff] %v218
    %369 = vst [vmem:[#allocation2 + $0x88] sm:$0xff] %v259
    %370 = vst [vmem:[#allocation2 + $0x90] sm:$0xff] %v300
    %371 = vst [vmem:[#allocation2 + $0x98] sm:$0xff] %v341
    %372 = vst [vmem:[#allocation2 + $0xa0] sm:$0xff] %v221
    %373 = vst [vmem:[#allocation2 + $0xa8] sm:$0xff] %v262
    %374 = vst [vmem:[#allocation2 + $0xb0] sm:$0xff] %v303
    %375 = vst [vmem:[#allocation2 + $0xb8] sm:$0xff] %v344
    %376 = vst [vmem:[#allocation2 + $0xc0] sm:$0xff] %v224
    %377 = vst [vmem:[#allocation2 + $0xc8] sm:$0xff] %v265
    %378 = vst [vmem:[#allocation2 + $0xd0] sm:$0xff] %v306
    %379 = vst [vmem:[#allocation2 + $0xd8] sm:$0xff] %v347
    %380 = vst [vmem:[#allocation2 + $0xe0] sm:$0xff] %v227
    %381 = vst [vmem:[#allocation2 + $0xe8] sm:$0xff] %v268
    %382 = vst [vmem:[#allocation2 + $0xf0] sm:$0xff] %v309
    %383 = vst [vmem:[#allocation2 + $0xf8] sm:$0xff] %v350
    %v384 = vld [vmem:[#allocation3] sm:$0xff]
    %v385 = vld [vmem:[#allocation4] sm:$0xff]
    %s386 = smul.u32 0, 4
    %s387 = smul.addr %s386, 8
    %s388 = scalar_lea.vmem [#allocation2], %s387
    %v389 = vld [vmem:[%s388] sm:$0xff]
    %v390 = vld [vmem:[%s388 + $0x8] sm:$0xff]
    %v391 = vld [vmem:[%s388 + $0x10] sm:$0xff]
    %v392 = vld [vmem:[%s388 + $0x18] sm:$0xff]
    %v393 = vld [vmem:[#allocation10] sm:$0xff]
    %v394 = vld [vmem:[#allocation10 + $0x8] sm:$0xff]
    %v395 = vld [vmem:[#allocation10 + $0x10] sm:$0xff]
    %v396 = vld [vmem:[#allocation10 + $0x18] sm:$0xff]
    %v397 = vld [vmem:[#allocation10 + $0x20] sm:$0xff]
    %v398 = vld [vmem:[#allocation10 + $0x28] sm:$0xff]
    %v399 = vld [vmem:[#allocation10 + $0x30] sm:$0xff]
    %v400 = vld [vmem:[#allocation10 + $0x38] sm:$0xff]
    %v401 = vld [vmem:[#allocation10 + $0x40] sm:$0xff]
    %v402 = vld [vmem:[#allocation10 + $0x48] sm:$0xff]
    %v403 = vld [vmem:[#allocation10 + $0x50] sm:$0xff]
    %v404 = vld [vmem:[#allocation10 + $0x58] sm:$0xff]
    %v405 = vld [vmem:[#allocation10 + $0x60] sm:$0xff]
    %v406 = vld [vmem:[#allocation10 + $0x68] sm:$0xff]
    %v407 = vld [vmem:[#allocation10 + $0x70] sm:$0xff]
    %v408 = vld [vmem:[#allocation10 + $0x78] sm:$0xff]
    %v409 = vld [vmem:[#allocation10 + $0x80] sm:$0xff]
    %v410 = vld [vmem:[#allocation10 + $0x88] sm:$0xff]
    %v411 = vld [vmem:[#allocation10 + $0x90] sm:$0xff]
    %v412 = vld [vmem:[#allocation10 + $0x98] sm:$0xff]
    %v413 = vld [vmem:[#allocation10 + $0xa0] sm:$0xff]
    %v414 = vld [vmem:[#allocation10 + $0xa8] sm:$0xff]
    %v415 = vld [vmem:[#allocation10 + $0xb0] sm:$0xff]
    %v416 = vld [vmem:[#allocation10 + $0xb8] sm:$0xff]
    %v417 = vld [vmem:[#allocation10 + $0xc0] sm:$0xff]
    %v418 = vld [vmem:[#allocation10 + $0xc8] sm:$0xff]
    %v419 = vld [vmem:[#allocation10 + $0xd0] sm:$0xff]
    %v420 = vld [vmem:[#allocation10 + $0xd8] sm:$0xff]
    %v421 = vld [vmem:[#allocation10 + $0xe0] sm:$0xff]
    %v422 = vld [vmem:[#allocation10 + $0xe8] sm:$0xff]
    %v423 = vld [vmem:[#allocation10 + $0xf0] sm:$0xff]
    %v424 = vld [vmem:[#allocation10 + $0xf8] sm:$0xff]
    %v425 = vld [vmem:[#allocation10 + $0x100] sm:$0xff]
    %v426 = vld [vmem:[#allocation10 + $0x108] sm:$0xff]
    %v427 = vld [vmem:[#allocation10 + $0x110] sm:$0xff]
    %v428 = vld [vmem:[#allocation10 + $0x118] sm:$0xff]
    %v429 = vld [vmem:[#allocation10 + $0x120] sm:$0xff]
    %v430 = vld [vmem:[#allocation10 + $0x128] sm:$0xff]
    %v431 = vld [vmem:[#allocation10 + $0x130] sm:$0xff]
    %v432 = vld [vmem:[#allocation10 + $0x138] sm:$0xff]
    %v433 = vld [vmem:[#allocation10 + $0x140] sm:$0xff]
    %v434 = vld [vmem:[#allocation10 + $0x148] sm:$0xff]
    %v435 = vld [vmem:[#allocation10 + $0x150] sm:$0xff]
    %v436 = vld [vmem:[#allocation10 + $0x158] sm:$0xff]
    %v437 = vld [vmem:[#allocation10 + $0x160] sm:$0xff]
    %v438 = vld [vmem:[#allocation10 + $0x168] sm:$0xff]
    %v439 = vld [vmem:[#allocation10 + $0x170] sm:$0xff]
    %v440 = vld [vmem:[#allocation10 + $0x178] sm:$0xff]
    %v441 = vld [vmem:[#allocation10 + $0x180] sm:$0xff]
    %v442 = vld [vmem:[#allocation10 + $0x188] sm:$0xff]
    %v443 = vld [vmem:[#allocation10 + $0x190] sm:$0xff]
    %v444 = vld [vmem:[#allocation10 + $0x198] sm:$0xff]
    %v445 = vld [vmem:[#allocation10 + $0x1a0] sm:$0xff]
    %v446 = vld [vmem:[#allocation10 + $0x1a8] sm:$0xff]
    %v447 = vld [vmem:[#allocation10 + $0x1b0] sm:$0xff]
    %v448 = vld [vmem:[#allocation10 + $0x1b8] sm:$0xff]
    %v449 = vld [vmem:[#allocation10 + $0x1c0] sm:$0xff]
    %v450 = vld [vmem:[#allocation10 + $0x1c8] sm:$0xff]
    %v451 = vld [vmem:[#allocation10 + $0x1d0] sm:$0xff]
    %v452 = vld [vmem:[#allocation10 + $0x1d8] sm:$0xff]
    %v453 = vld [vmem:[#allocation10 + $0x1e0] sm:$0xff]
    %v454 = vld [vmem:[#allocation10 + $0x1e8] sm:$0xff]
    %v455 = vld [vmem:[#allocation10 + $0x1f0] sm:$0xff]
    %v456 = vld [vmem:[#allocation10 + $0x1f8] sm:$0xff]
    %457 = vmatpush.msra.mxu0 %v453
    %458 = vmatpush.msra.mxu0 %v449
    %459 = vmatpush.msra.mxu0 %v445
    %460 = vmatpush.msra.mxu0 %v441
    %461 = vmatpush.msra.mxu0 %v437
    %462 = vmatpush.msra.mxu0 %v433
    %463 = vmatpush.msra.mxu0 %v429
    %464 = vmatpush.msra.mxu0 %v425
    %465 = vmatpush.msra.mxu0 %v421
    %466 = vmatpush.msra.mxu0 %v417
    %467 = vmatpush.msra.mxu0 %v413
    %468 = vmatpush.msra.mxu0 %v409
    %469 = vmatpush.msra.mxu0 %v405
    %470 = vmatpush.msra.mxu0 %v401
    %471 = vmatpush.msra.mxu0 %v397
    %472 = vmatpush.msra.mxu0 %v393
    %473 = vmatmul.f32.gmra.mxu0 %v384
    %v474 = vpop.f32.mrf.mxu0
    %v475 = vadd.f32 0.0, %v474
    %476 = vdwg.mxu0
    %477 = vmatpush.msra.mxu0 %v454
    %478 = vmatpush.msra.mxu0 %v450
    %479 = vmatpush.msra.mxu0 %v446
    %480 = vmatpush.msra.mxu0 %v442
    %481 = vmatpush.msra.mxu0 %v438
    %482 = vmatpush.msra.mxu0 %v434
    %483 = vmatpush.msra.mxu0 %v430
    %484 = vmatpush.msra.mxu0 %v426
    %485 = vmatpush.msra.mxu0 %v422
    %486 = vmatpush.msra.mxu0 %v418
    %487 = vmatpush.msra.mxu0 %v414
    %488 = vmatpush.msra.mxu0 %v410
    %489 = vmatpush.msra.mxu0 %v406
    %490 = vmatpush.msra.mxu0 %v402
    %491 = vmatpush.msra.mxu0 %v398
    %492 = vmatpush.msra.mxu0 %v394
    %493 = vmatmul.f32.gmra.mxu0 %v384
    %v494 = vpop.f32.mrf.mxu0
    %v495 = vadd.f32 0.0, %v494
    %496 = vdwg.mxu0
    %497 = vmatpush.msra.mxu0 %v455
    %498 = vmatpush.msra.mxu0 %v451
    %499 = vmatpush.msra.mxu0 %v447
    %500 = vmatpush.msra.mxu0 %v443
    %501 = vmatpush.msra.mxu0 %v439
    %502 = vmatpush.msra.mxu0 %v435
    %503 = vmatpush.msra.mxu0 %v431
    %504 = vmatpush.msra.mxu0 %v427
    %505 = vmatpush.msra.mxu0 %v423
    %506 = vmatpush.msra.mxu0 %v419
    %507 = vmatpush.msra.mxu0 %v415
    %508 = vmatpush.msra.mxu0 %v411
    %509 = vmatpush.msra.mxu0 %v407
    %510 = vmatpush.msra.mxu0 %v403
    %511 = vmatpush.msra.mxu0 %v399
    %512 = vmatpush.msra.mxu0 %v395
    %513 = vmatmul.f32.gmra.mxu0 %v384
    %v514 = vpop.f32.mrf.mxu0
    %v515 = vadd.f32 0.0, %v514
    %516 = vdwg.mxu0
    %517 = vmatpush.msra.mxu0 %v456
    %518 = vmatpush.msra.mxu0 %v452
    %519 = vmatpush.msra.mxu0 %v448
    %520 = vmatpush.msra.mxu0 %v444
    %521 = vmatpush.msra.mxu0 %v440
    %522 = vmatpush.msra.mxu0 %v436
    %523 = vmatpush.msra.mxu0 %v432
    %524 = vmatpush.msra.mxu0 %v428
    %525 = vmatpush.msra.mxu0 %v424
    %526 = vmatpush.msra.mxu0 %v420
    %527 = vmatpush.msra.mxu0 %v416
    %528 = vmatpush.msra.mxu0 %v412
    %529 = vmatpush.msra.mxu0 %v408
    %530 = vmatpush.msra.mxu0 %v404
    %531 = vmatpush.msra.mxu0 %v400
    %532 = vmatpush.msra.mxu0 %v396
    %533 = vmatmul.f32.gmra.mxu0 %v384
    %v534 = vpop.f32.mrf.mxu0
    %v535 = vadd.f32 0.0, %v534
    %536 = vdwg.mxu0
    %v537 = vadd.f32 %v389, %v475
    %v538 = vadd.f32 %v390, %v495
    %v539 = vadd.f32 %v391, %v515
    %v540 = vadd.f32 %v392, %v535
    %v541 = vxor.u32 %v537, 2147483648
    %v542 = vxor.u32 %v538, 2147483648
    %v543 = vxor.u32 %v540, 2147483648
    %v544 = vmul.f32 %v541, 1.442695
    %v545 = vpow.pop %v544
    %v546 = vmul.f32 %v542, 1.442695
    %v547 = vpow.pop %v546
    %v548 = vmul.f32 %v543, 1.442695
    %v549 = vpow.pop %v548
    %v550 = vadd.f32 %v545, 1.0
    %v551 = vadd.f32 %v547, 1.0
    %v552 = vadd.f32 %v549, 1.0
    %v553 = vrcp.pop %v550
    %v554 = vmul.f32 %v550, %v553
    %v555 = vsub.f32 1.0, %v554
    %v556 = vmul.f32 %v553, %v555
    %v557 = vadd.f32 %v553, %v556
    %vm558 = vweird.f32 %v550
    %vm559 = vweird.f32 %v553
    %vm560 = vmor %vm558, %vm559
    %v561 = vsel %vm560, %v553, %v557
    %v562 = vand.u32 2147483647, %v550
    %vm563 = vcmp.eq.f32.partialorder %v562, 8.507059e+37
    %v564 = vand.u32 %v550, 2147483648
    %v565 = vor.u32 1.1754944e-38, %v564
    %v566 = vsel %vm563, %v565, %v561
    %v567 = vmul.f32 1.0, %v566
    %v568 = vrcp.pop %v551
    %v569 = vmul.f32 %v551, %v568
    %v570 = vsub.f32 1.0, %v569
    %v571 = vmul.f32 %v568, %v570
    %v572 = vadd.f32 %v568, %v571
    %vm573 = vweird.f32 %v551
    %vm574 = vweird.f32 %v568
    %vm575 = vmor %vm573, %vm574
    %v576 = vsel %vm575, %v568, %v572
    %v577 = vand.u32 2147483647, %v551
    %vm578 = vcmp.eq.f32.partialorder %v577, 8.507059e+37
    %v579 = vand.u32 %v551, 2147483648
    %v580 = vor.u32 1.1754944e-38, %v579
    %v581 = vsel %vm578, %v580, %v576
    %v582 = vmul.f32 1.0, %v581
    %v583 = vrcp.pop %v552
    %v584 = vmul.f32 %v552, %v583
    %v585 = vsub.f32 1.0, %v584
    %v586 = vmul.f32 %v583, %v585
    %v587 = vadd.f32 %v583, %v586
    %vm588 = vweird.f32 %v552
    %vm589 = vweird.f32 %v583
    %vm590 = vmor %vm588, %vm589
    %v591 = vsel %vm590, %v583, %v587
    %v592 = vand.u32 2147483647, %v552
    %vm593 = vcmp.eq.f32.partialorder %v592, 8.507059e+37
    %v594 = vand.u32 %v552, 2147483648
    %v595 = vor.u32 1.1754944e-38, %v594
    %v596 = vsel %vm593, %v595, %v591
    %v597 = vmul.f32 1.0, %v596
    %v598 = vtanh.pop %v539
    %v599 = vmul.f32 %v582, %v385
    %v600 = vmul.f32 %v567, %v598
    %v601 = vadd.f32 %v599, %v600
    %v602 = vtanh.pop %v601
    %v603 = vmul.f32 %v597, %v602
    %s604 = smul.u32 1, 4
    %s605 = smul.addr %s604, 8
    %s606 = scalar_lea.vmem [#allocation2], %s605
    %v607 = vld [vmem:[%s606] sm:$0xff]
    %v608 = vld [vmem:[%s606 + $0x8] sm:$0xff]
    %v609 = vld [vmem:[%s606 + $0x10] sm:$0xff]
    %v610 = vld [vmem:[%s606 + $0x18] sm:$0xff]
    %611 = vmatpush.msra.mxu0 %v453
    %612 = vmatpush.msra.mxu0 %v449
    %613 = vmatpush.msra.mxu0 %v445
    %614 = vmatpush.msra.mxu0 %v441
    %615 = vmatpush.msra.mxu0 %v437
    %616 = vmatpush.msra.mxu0 %v433
    %617 = vmatpush.msra.mxu0 %v429
    %618 = vmatpush.msra.mxu0 %v425
    %619 = vmatpush.msra.mxu0 %v421
    %620 = vmatpush.msra.mxu0 %v417
    %621 = vmatpush.msra.mxu0 %v413
    %622 = vmatpush.msra.mxu0 %v409
    %623 = vmatpush.msra.mxu0 %v405
    %624 = vmatpush.msra.mxu0 %v401
    %625 = vmatpush.msra.mxu0 %v397
    %626 = vmatpush.msra.mxu0 %v393
    %627 = vmatmul.f32.gmra.mxu0 %v603
    %v628 = vpop.f32.mrf.mxu0
    %v629 = vadd.f32 0.0, %v628
    %630 = vdwg.mxu0
    %631 = vmatpush.msra.mxu0 %v454
    %632 = vmatpush.msra.mxu0 %v450
    %633 = vmatpush.msra.mxu0 %v446
    %634 = vmatpush.msra.mxu0 %v442
    %635 = vmatpush.msra.mxu0 %v438
    %636 = vmatpush.msra.mxu0 %v434
    %637 = vmatpush.msra.mxu0 %v430
    %638 = vmatpush.msra.mxu0 %v426
    %639 = vmatpush.msra.mxu0 %v422
    %640 = vmatpush.msra.mxu0 %v418
    %641 = vmatpush.msra.mxu0 %v414
    %642 = vmatpush.msra.mxu0 %v410
    %643 = vmatpush.msra.mxu0 %v406
    %644 = vmatpush.msra.mxu0 %v402
    %645 = vmatpush.msra.mxu0 %v398
    %646 = vmatpush.msra.mxu0 %v394
    %647 = vmatmul.f32.gmra.mxu0 %v603
    %v648 = vpop.f32.mrf.mxu0
    %v649 = vadd.f32 0.0, %v648
    %650 = vdwg.mxu0
    %651 = vmatpush.msra.mxu0 %v455
    %652 = vmatpush.msra.mxu0 %v451
    %653 = vmatpush.msra.mxu0 %v447
    %654 = vmatpush.msra.mxu0 %v443
    %655 = vmatpush.msra.mxu0 %v439
    %656 = vmatpush.msra.mxu0 %v435
    %657 = vmatpush.msra.mxu0 %v431
    %658 = vmatpush.msra.mxu0 %v427
    %659 = vmatpush.msra.mxu0 %v423
    %660 = vmatpush.msra.mxu0 %v419
    %661 = vmatpush.msra.mxu0 %v415
    %662 = vmatpush.msra.mxu0 %v411
    %663 = vmatpush.msra.mxu0 %v407
    %664 = vmatpush.msra.mxu0 %v403
    %665 = vmatpush.msra.mxu0 %v399
    %666 = vmatpush.msra.mxu0 %v395
    %667 = vmatmul.f32.gmra.mxu0 %v603
    %v668 = vpop.f32.mrf.mxu0
    %v669 = vadd.f32 0.0, %v668
    %670 = vdwg.mxu0
    %671 = vmatpush.msra.mxu0 %v456
    %672 = vmatpush.msra.mxu0 %v452
    %673 = vmatpush.msra.mxu0 %v448
    %674 = vmatpush.msra.mxu0 %v444
    %675 = vmatpush.msra.mxu0 %v440
    %676 = vmatpush.msra.mxu0 %v436
    %677 = vmatpush.msra.mxu0 %v432
    %678 = vmatpush.msra.mxu0 %v428
    %679 = vmatpush.msra.mxu0 %v424
    %680 = vmatpush.msra.mxu0 %v420
    %681 = vmatpush.msra.mxu0 %v416
    %682 = vmatpush.msra.mxu0 %v412
    %683 = vmatpush.msra.mxu0 %v408
    %684 = vmatpush.msra.mxu0 %v404
    %685 = vmatpush.msra.mxu0 %v400
    %686 = vmatpush.msra.mxu0 %v396
    %687 = vmatmul.f32.gmra.mxu0 %v603
    %v688 = vpop.f32.mrf.mxu0
    %v689 = vadd.f32 0.0, %v688
    %690 = vdwg.mxu0
    %v691 = vadd.f32 %v607, %v629
    %v692 = vadd.f32 %v608, %v649
    %v693 = vadd.f32 %v609, %v669
    %v694 = vadd.f32 %v610, %v689
    %v695 = vxor.u32 %v691, 2147483648
    %v696 = vxor.u32 %v692, 2147483648
    %v697 = vxor.u32 %v694, 2147483648
    %v698 = vmul.f32 %v695, 1.442695
    %v699 = vpow.pop %v698
    %v700 = vmul.f32 %v696, 1.442695
    %v701 = vpow.pop %v700
    %v702 = vmul.f32 %v697, 1.442695
    %v703 = vpow.pop %v702
    %v704 = vadd.f32 %v699, 1.0
    %v705 = vadd.f32 %v701, 1.0
    %v706 = vadd.f32 %v703, 1.0
    %v707 = vrcp.pop %v704
    %v708 = vmul.f32 %v704, %v707
    %v709 = vsub.f32 1.0, %v708
    %v710 = vmul.f32 %v707, %v709
    %v711 = vadd.f32 %v707, %v710
    %vm712 = vweird.f32 %v704
    %vm713 = vweird.f32 %v707
    %vm714 = vmor %vm712, %vm713
    %v715 = vsel %vm714, %v707, %v711
    %v716 = vand.u32 2147483647, %v704
    %vm717 = vcmp.eq.f32.partialorder %v716, 8.507059e+37
    %v718 = vand.u32 %v704, 2147483648
    %v719 = vor.u32 1.1754944e-38, %v718
    %v720 = vsel %vm717, %v719, %v715
    %v721 = vmul.f32 1.0, %v720
    %v722 = vrcp.pop %v705
    %v723 = vmul.f32 %v705, %v722
    %v724 = vsub.f32 1.0, %v723
    %v725 = vmul.f32 %v722, %v724
    %v726 = vadd.f32 %v722, %v725
    %vm727 = vweird.f32 %v705
    %vm728 = vweird.f32 %v722
    %vm729 = vmor %vm727, %vm728
    %v730 = vsel %vm729, %v722, %v726
    %v731 = vand.u32 2147483647, %v705
    %vm732 = vcmp.eq.f32.partialorder %v731, 8.507059e+37
    %v733 = vand.u32 %v705, 2147483648
    %v734 = vor.u32 1.1754944e-38, %v733
    %v735 = vsel %vm732, %v734, %v730
    %v736 = vmul.f32 1.0, %v735
    %v737 = vrcp.pop %v706
    %v738 = vmul.f32 %v706, %v737
    %v739 = vsub.f32 1.0, %v738
    %v740 = vmul.f32 %v737, %v739
    %v741 = vadd.f32 %v737, %v740
    %vm742 = vweird.f32 %v706
    %vm743 = vweird.f32 %v737
    %vm744 = vmor %vm742, %vm743
    %v745 = vsel %vm744, %v737, %v741
    %v746 = vand.u32 2147483647, %v706
    %vm747 = vcmp.eq.f32.partialorder %v746, 8.507059e+37
    %v748 = vand.u32 %v706, 2147483648
    %v749 = vor.u32 1.1754944e-38, %v748
    %v750 = vsel %vm747, %v749, %v745
    %v751 = vmul.f32 1.0, %v750
    %v752 = vtanh.pop %v693
    %v753 = vmul.f32 %v736, %v601
    %v754 = vmul.f32 %v721, %v752
    %v755 = vadd.f32 %v753, %v754
    %v756 = vtanh.pop %v755
    %v757 = vmul.f32 %v751, %v756
    %s758 = smul.u32 2, 4
    %s759 = smul.addr %s758, 8
    %s760 = scalar_lea.vmem [#allocation2], %s759
    %v761 = vld [vmem:[%s760] sm:$0xff]
    %v762 = vld [vmem:[%s760 + $0x8] sm:$0xff]
    %v763 = vld [vmem:[%s760 + $0x10] sm:$0xff]
    %v764 = vld [vmem:[%s760 + $0x18] sm:$0xff]
    %765 = vmatpush.msra.mxu0 %v453
    %766 = vmatpush.msra.mxu0 %v449
    %767 = vmatpush.msra.mxu0 %v445
    %768 = vmatpush.msra.mxu0 %v441
    %769 = vmatpush.msra.mxu0 %v437
    %770 = vmatpush.msra.mxu0 %v433
    %771 = vmatpush.msra.mxu0 %v429
    %772 = vmatpush.msra.mxu0 %v425
    %773 = vmatpush.msra.mxu0 %v421
    %774 = vmatpush.msra.mxu0 %v417
    %775 = vmatpush.msra.mxu0 %v413
    %776 = vmatpush.msra.mxu0 %v409
    %777 = vmatpush.msra.mxu0 %v405
    %778 = vmatpush.msra.mxu0 %v401
    %779 = vmatpush.msra.mxu0 %v397
    %780 = vmatpush.msra.mxu0 %v393
    %781 = vmatmul.f32.gmra.mxu0 %v757
    %v782 = vpop.f32.mrf.mxu0
    %v783 = vadd.f32 0.0, %v782
    %784 = vdwg.mxu0
    %785 = vmatpush.msra.mxu0 %v454
    %786 = vmatpush.msra.mxu0 %v450
    %787 = vmatpush.msra.mxu0 %v446
    %788 = vmatpush.msra.mxu0 %v442
    %789 = vmatpush.msra.mxu0 %v438
    %790 = vmatpush.msra.mxu0 %v434
    %791 = vmatpush.msra.mxu0 %v430
    %792 = vmatpush.msra.mxu0 %v426
    %793 = vmatpush.msra.mxu0 %v422
    %794 = vmatpush.msra.mxu0 %v418
    %795 = vmatpush.msra.mxu0 %v414
    %796 = vmatpush.msra.mxu0 %v410
    %797 = vmatpush.msra.mxu0 %v406
    %798 = vmatpush.msra.mxu0 %v402
    %799 = vmatpush.msra.mxu0 %v398
    %800 = vmatpush.msra.mxu0 %v394
    %801 = vmatmul.f32.gmra.mxu0 %v757
    %v802 = vpop.f32.mrf.mxu0
    %v803 = vadd.f32 0.0, %v802
    %804 = vdwg.mxu0
    %805 = vmatpush.msra.mxu0 %v455
    %806 = vmatpush.msra.mxu0 %v451
    %807 = vmatpush.msra.mxu0 %v447
    %808 = vmatpush.msra.mxu0 %v443
    %809 = vmatpush.msra.mxu0 %v439
    %810 = vmatpush.msra.mxu0 %v435
    %811 = vmatpush.msra.mxu0 %v431
    %812 = vmatpush.msra.mxu0 %v427
    %813 = vmatpush.msra.mxu0 %v423
    %814 = vmatpush.msra.mxu0 %v419
    %815 = vmatpush.msra.mxu0 %v415
    %816 = vmatpush.msra.mxu0 %v411
    %817 = vmatpush.msra.mxu0 %v407
    %818 = vmatpush.msra.mxu0 %v403
    %819 = vmatpush.msra.mxu0 %v399
    %820 = vmatpush.msra.mxu0 %v395
    %821 = vmatmul.f32.gmra.mxu0 %v757
    %v822 = vpop.f32.mrf.mxu0
    %v823 = vadd.f32 0.0, %v822
    %824 = vdwg.mxu0
    %825 = vmatpush.msra.mxu0 %v456
    %826 = vmatpush.msra.mxu0 %v452
    %827 = vmatpush.msra.mxu0 %v448
    %828 = vmatpush.msra.mxu0 %v444
    %829 = vmatpush.msra.mxu0 %v440
    %830 = vmatpush.msra.mxu0 %v436
    %831 = vmatpush.msra.mxu0 %v432
    %832 = vmatpush.msra.mxu0 %v428
    %833 = vmatpush.msra.mxu0 %v424
    %834 = vmatpush.msra.mxu0 %v420
    %835 = vmatpush.msra.mxu0 %v416
    %836 = vmatpush.msra.mxu0 %v412
    %837 = vmatpush.msra.mxu0 %v408
    %838 = vmatpush.msra.mxu0 %v404
    %839 = vmatpush.msra.mxu0 %v400
    %840 = vmatpush.msra.mxu0 %v396
    %841 = vmatmul.f32.gmra.mxu0 %v757
    %v842 = vpop.f32.mrf.mxu0
    %v843 = vadd.f32 0.0, %v842
    %844 = vdwg.mxu0
    %v845 = vadd.f32 %v761, %v783
    %v846 = vadd.f32 %v762, %v803
    %v847 = vadd.f32 %v763, %v823
    %v848 = vadd.f32 %v764, %v843
    %v849 = vxor.u32 %v845, 2147483648
    %v850 = vxor.u32 %v846, 2147483648
    %v851 = vxor.u32 %v848, 2147483648
    %v852 = vmul.f32 %v849, 1.442695
    %v853 = vpow.pop %v852
    %v854 = vmul.f32 %v850, 1.442695
    %v855 = vpow.pop %v854
    %v856 = vmul.f32 %v851, 1.442695
    %v857 = vpow.pop %v856
    %v858 = vadd.f32 %v853, 1.0
    %v859 = vadd.f32 %v855, 1.0
    %v860 = vadd.f32 %v857, 1.0
    %v861 = vrcp.pop %v858
    %v862 = vmul.f32 %v858, %v861
    %v863 = vsub.f32 1.0, %v862
    %v864 = vmul.f32 %v861, %v863
    %v865 = vadd.f32 %v861, %v864
    %vm866 = vweird.f32 %v858
    %vm867 = vweird.f32 %v861
    %vm868 = vmor %vm866, %vm867
    %v869 = vsel %vm868, %v861, %v865
    %v870 = vand.u32 2147483647, %v858
    %vm871 = vcmp.eq.f32.partialorder %v870, 8.507059e+37
    %v872 = vand.u32 %v858, 2147483648
    %v873 = vor.u32 1.1754944e-38, %v872
    %v874 = vsel %vm871, %v873, %v869
    %v875 = vmul.f32 1.0, %v874
    %v876 = vrcp.pop %v859
    %v877 = vmul.f32 %v859, %v876
    %v878 = vsub.f32 1.0, %v877
    %v879 = vmul.f32 %v876, %v878
    %v880 = vadd.f32 %v876, %v879
    %vm881 = vweird.f32 %v859
    %vm882 = vweird.f32 %v876
    %vm883 = vmor %vm881, %vm882
    %v884 = vsel %vm883, %v876, %v880
    %v885 = vand.u32 2147483647, %v859
    %vm886 = vcmp.eq.f32.partialorder %v885, 8.507059e+37
    %v887 = vand.u32 %v859, 2147483648
    %v888 = vor.u32 1.1754944e-38, %v887
    %v889 = vsel %vm886, %v888, %v884
    %v890 = vmul.f32 1.0, %v889
    %v891 = vrcp.pop %v860
    %v892 = vmul.f32 %v860, %v891
    %v893 = vsub.f32 1.0, %v892
    %v894 = vmul.f32 %v891, %v893
    %v895 = vadd.f32 %v891, %v894
    %vm896 = vweird.f32 %v860
    %vm897 = vweird.f32 %v891
    %vm898 = vmor %vm896, %vm897
    %v899 = vsel %vm898, %v891, %v895
    %v900 = vand.u32 2147483647, %v860
    %vm901 = vcmp.eq.f32.partialorder %v900, 8.507059e+37
    %v902 = vand.u32 %v860, 2147483648
    %v903 = vor.u32 1.1754944e-38, %v902
    %v904 = vsel %vm901, %v903, %v899
    %v905 = vmul.f32 1.0, %v904
    %v906 = vtanh.pop %v847
    %v907 = vmul.f32 %v890, %v755
    %v908 = vmul.f32 %v875, %v906
    %v909 = vadd.f32 %v907, %v908
    %v910 = vtanh.pop %v909
    %v911 = vmul.f32 %v905, %v910
    %s912 = smul.u32 3, 4
    %s913 = smul.addr %s912, 8
    %s914 = scalar_lea.vmem [#allocation2], %s913
    %v915 = vld [vmem:[%s914] sm:$0xff]
    %v916 = vld [vmem:[%s914 + $0x8] sm:$0xff]
    %v917 = vld [vmem:[%s914 + $0x10] sm:$0xff]
    %v918 = vld [vmem:[%s914 + $0x18] sm:$0xff]
    %919 = vmatpush.msra.mxu0 %v453
    %920 = vmatpush.msra.mxu0 %v449
    %921 = vmatpush.msra.mxu0 %v445
    %922 = vmatpush.msra.mxu0 %v441
    %923 = vmatpush.msra.mxu0 %v437
    %924 = vmatpush.msra.mxu0 %v433
    %925 = vmatpush.msra.mxu0 %v429
    %926 = vmatpush.msra.mxu0 %v425
    %927 = vmatpush.msra.mxu0 %v421
    %928 = vmatpush.msra.mxu0 %v417
    %929 = vmatpush.msra.mxu0 %v413
    %930 = vmatpush.msra.mxu0 %v409
    %931 = vmatpush.msra.mxu0 %v405
    %932 = vmatpush.msra.mxu0 %v401
    %933 = vmatpush.msra.mxu0 %v397
    %934 = vmatpush.msra.mxu0 %v393
    %935 = vmatmul.f32.gmra.mxu0 %v911
    %v936 = vpop.f32.mrf.mxu0
    %v937 = vadd.f32 0.0, %v936
    %938 = vdwg.mxu0
    %939 = vmatpush.msra.mxu0 %v454
    %940 = vmatpush.msra.mxu0 %v450
    %941 = vmatpush.msra.mxu0 %v446
    %942 = vmatpush.msra.mxu0 %v442
    %943 = vmatpush.msra.mxu0 %v438
    %944 = vmatpush.msra.mxu0 %v434
    %945 = vmatpush.msra.mxu0 %v430
    %946 = vmatpush.msra.mxu0 %v426
    %947 = vmatpush.msra.mxu0 %v422
    %948 = vmatpush.msra.mxu0 %v418
    %949 = vmatpush.msra.mxu0 %v414
    %950 = vmatpush.msra.mxu0 %v410
    %951 = vmatpush.msra.mxu0 %v406
    %952 = vmatpush.msra.mxu0 %v402
    %953 = vmatpush.msra.mxu0 %v398
    %954 = vmatpush.msra.mxu0 %v394
    %955 = vmatmul.f32.gmra.mxu0 %v911
    %v956 = vpop.f32.mrf.mxu0
    %v957 = vadd.f32 0.0, %v956
    %958 = vdwg.mxu0
    %959 = vmatpush.msra.mxu0 %v455
    %960 = vmatpush.msra.mxu0 %v451
    %961 = vmatpush.msra.mxu0 %v447
    %962 = vmatpush.msra.mxu0 %v443
    %963 = vmatpush.msra.mxu0 %v439
    %964 = vmatpush.msra.mxu0 %v435
    %965 = vmatpush.msra.mxu0 %v431
    %966 = vmatpush.msra.mxu0 %v427
    %967 = vmatpush.msra.mxu0 %v423
    %968 = vmatpush.msra.mxu0 %v419
    %969 = vmatpush.msra.mxu0 %v415
    %970 = vmatpush.msra.mxu0 %v411
    %971 = vmatpush.msra.mxu0 %v407
    %972 = vmatpush.msra.mxu0 %v403
    %973 = vmatpush.msra.mxu0 %v399
    %974 = vmatpush.msra.mxu0 %v395
    %975 = vmatmul.f32.gmra.mxu0 %v911
    %v976 = vpop.f32.mrf.mxu0
    %v977 = vadd.f32 0.0, %v976
    %978 = vdwg.mxu0
    %979 = vmatpush.msra.mxu0 %v456
    %980 = vmatpush.msra.mxu0 %v452
    %981 = vmatpush.msra.mxu0 %v448
    %982 = vmatpush.msra.mxu0 %v444
    %983 = vmatpush.msra.mxu0 %v440
    %984 = vmatpush.msra.mxu0 %v436
    %985 = vmatpush.msra.mxu0 %v432
    %986 = vmatpush.msra.mxu0 %v428
    %987 = vmatpush.msra.mxu0 %v424
    %988 = vmatpush.msra.mxu0 %v420
    %989 = vmatpush.msra.mxu0 %v416
    %990 = vmatpush.msra.mxu0 %v412
    %991 = vmatpush.msra.mxu0 %v408
    %992 = vmatpush.msra.mxu0 %v404
    %993 = vmatpush.msra.mxu0 %v400
    %994 = vmatpush.msra.mxu0 %v396
    %995 = vmatmul.f32.gmra.mxu0 %v911
    %v996 = vpop.f32.mrf.mxu0
    %v997 = vadd.f32 0.0, %v996
    %998 = vdwg.mxu0
    %v999 = vadd.f32 %v915, %v937
    %v1000 = vadd.f32 %v916, %v957
    %v1001 = vadd.f32 %v917, %v977
    %v1002 = vadd.f32 %v918, %v997
    %v1003 = vxor.u32 %v999, 2147483648
    %v1004 = vxor.u32 %v1000, 2147483648
    %v1005 = vxor.u32 %v1002, 2147483648
    %v1006 = vmul.f32 %v1003, 1.442695
    %v1007 = vpow.pop %v1006
    %v1008 = vmul.f32 %v1004, 1.442695
    %v1009 = vpow.pop %v1008
    %v1010 = vmul.f32 %v1005, 1.442695
    %v1011 = vpow.pop %v1010
    %v1012 = vadd.f32 %v1007, 1.0
    %v1013 = vadd.f32 %v1009, 1.0
    %v1014 = vadd.f32 %v1011, 1.0
    %v1015 = vrcp.pop %v1012
    %v1016 = vmul.f32 %v1012, %v1015
    %v1017 = vsub.f32 1.0, %v1016
    %v1018 = vmul.f32 %v1015, %v1017
    %v1019 = vadd.f32 %v1015, %v1018
    %vm1020 = vweird.f32 %v1012
    %vm1021 = vweird.f32 %v1015
    %vm1022 = vmor %vm1020, %vm1021
    %v1023 = vsel %vm1022, %v1015, %v1019
    %v1024 = vand.u32 2147483647, %v1012
    %vm1025 = vcmp.eq.f32.partialorder %v1024, 8.507059e+37
    %v1026 = vand.u32 %v1012, 2147483648
    %v1027 = vor.u32 1.1754944e-38, %v1026
    %v1028 = vsel %vm1025, %v1027, %v1023
    %v1029 = vmul.f32 1.0, %v1028
    %v1030 = vrcp.pop %v1013
    %v1031 = vmul.f32 %v1013, %v1030
    %v1032 = vsub.f32 1.0, %v1031
    %v1033 = vmul.f32 %v1030, %v1032
    %v1034 = vadd.f32 %v1030, %v1033
    %vm1035 = vweird.f32 %v1013
    %vm1036 = vweird.f32 %v1030
    %vm1037 = vmor %vm1035, %vm1036
    %v1038 = vsel %vm1037, %v1030, %v1034
    %v1039 = vand.u32 2147483647, %v1013
    %vm1040 = vcmp.eq.f32.partialorder %v1039, 8.507059e+37
    %v1041 = vand.u32 %v1013, 2147483648
    %v1042 = vor.u32 1.1754944e-38, %v1041
    %v1043 = vsel %vm1040, %v1042, %v1038
    %v1044 = vmul.f32 1.0, %v1043
    %v1045 = vrcp.pop %v1014
    %v1046 = vmul.f32 %v1014, %v1045
    %v1047 = vsub.f32 1.0, %v1046
    %v1048 = vmul.f32 %v1045, %v1047
    %v1049 = vadd.f32 %v1045, %v1048
    %vm1050 = vweird.f32 %v1014
    %vm1051 = vweird.f32 %v1045
    %vm1052 = vmor %vm1050, %vm1051
    %v1053 = vsel %vm1052, %v1045, %v1049
    %v1054 = vand.u32 2147483647, %v1014
    %vm1055 = vcmp.eq.f32.partialorder %v1054, 8.507059e+37
    %v1056 = vand.u32 %v1014, 2147483648
    %v1057 = vor.u32 1.1754944e-38, %v1056
    %v1058 = vsel %vm1055, %v1057, %v1053
    %v1059 = vmul.f32 1.0, %v1058
    %v1060 = vtanh.pop %v1001
    %v1061 = vmul.f32 %v1044, %v909
    %v1062 = vmul.f32 %v1029, %v1060
    %v1063 = vadd.f32 %v1061, %v1062
    %v1064 = vtanh.pop %v1063
    %v1065 = vmul.f32 %v1059, %v1064
    %s1066 = smul.u32 4, 4
    %s1067 = smul.addr %s1066, 8
    %s1068 = scalar_lea.vmem [#allocation2], %s1067
    %v1069 = vld [vmem:[%s1068] sm:$0xff]
    %v1070 = vld [vmem:[%s1068 + $0x8] sm:$0xff]
    %v1071 = vld [vmem:[%s1068 + $0x10] sm:$0xff]
    %v1072 = vld [vmem:[%s1068 + $0x18] sm:$0xff]
    %1073 = vmatpush.msra.mxu0 %v453
    %1074 = vmatpush.msra.mxu0 %v449
    %1075 = vmatpush.msra.mxu0 %v445
    %1076 = vmatpush.msra.mxu0 %v441
    %1077 = vmatpush.msra.mxu0 %v437
    %1078 = vmatpush.msra.mxu0 %v433
    %1079 = vmatpush.msra.mxu0 %v429
    %1080 = vmatpush.msra.mxu0 %v425
    %1081 = vmatpush.msra.mxu0 %v421
    %1082 = vmatpush.msra.mxu0 %v417
    %1083 = vmatpush.msra.mxu0 %v413
    %1084 = vmatpush.msra.mxu0 %v409
    %1085 = vmatpush.msra.mxu0 %v405
    %1086 = vmatpush.msra.mxu0 %v401
    %1087 = vmatpush.msra.mxu0 %v397
    %1088 = vmatpush.msra.mxu0 %v393
    %1089 = vmatmul.f32.gmra.mxu0 %v1065
    %v1090 = vpop.f32.mrf.mxu0
    %v1091 = vadd.f32 0.0, %v1090
    %1092 = vdwg.mxu0
    %1093 = vmatpush.msra.mxu0 %v454
    %1094 = vmatpush.msra.mxu0 %v450
    %1095 = vmatpush.msra.mxu0 %v446
    %1096 = vmatpush.msra.mxu0 %v442
    %1097 = vmatpush.msra.mxu0 %v438
    %1098 = vmatpush.msra.mxu0 %v434
    %1099 = vmatpush.msra.mxu0 %v430
    %1100 = vmatpush.msra.mxu0 %v426
    %1101 = vmatpush.msra.mxu0 %v422
    %1102 = vmatpush.msra.mxu0 %v418
    %1103 = vmatpush.msra.mxu0 %v414
    %1104 = vmatpush.msra.mxu0 %v410
    %1105 = vmatpush.msra.mxu0 %v406
    %1106 = vmatpush.msra.mxu0 %v402
    %1107 = vmatpush.msra.mxu0 %v398
    %1108 = vmatpush.msra.mxu0 %v394
    %1109 = vmatmul.f32.gmra.mxu0 %v1065
    %v1110 = vpop.f32.mrf.mxu0
    %v1111 = vadd.f32 0.0, %v1110
    %1112 = vdwg.mxu0
    %1113 = vmatpush.msra.mxu0 %v455
    %1114 = vmatpush.msra.mxu0 %v451
    %1115 = vmatpush.msra.mxu0 %v447
    %1116 = vmatpush.msra.mxu0 %v443
    %1117 = vmatpush.msra.mxu0 %v439
    %1118 = vmatpush.msra.mxu0 %v435
    %1119 = vmatpush.msra.mxu0 %v431
    %1120 = vmatpush.msra.mxu0 %v427
    %1121 = vmatpush.msra.mxu0 %v423
    %1122 = vmatpush.msra.mxu0 %v419
    %1123 = vmatpush.msra.mxu0 %v415
    %1124 = vmatpush.msra.mxu0 %v411
    %1125 = vmatpush.msra.mxu0 %v407
    %1126 = vmatpush.msra.mxu0 %v403
    %1127 = vmatpush.msra.mxu0 %v399
    %1128 = vmatpush.msra.mxu0 %v395
    %1129 = vmatmul.f32.gmra.mxu0 %v1065
    %v1130 = vpop.f32.mrf.mxu0
    %v1131 = vadd.f32 0.0, %v1130
    %1132 = vdwg.mxu0
    %1133 = vmatpush.msra.mxu0 %v456
    %1134 = vmatpush.msra.mxu0 %v452
    %1135 = vmatpush.msra.mxu0 %v448
    %1136 = vmatpush.msra.mxu0 %v444
    %1137 = vmatpush.msra.mxu0 %v440
    %1138 = vmatpush.msra.mxu0 %v436
    %1139 = vmatpush.msra.mxu0 %v432
    %1140 = vmatpush.msra.mxu0 %v428
    %1141 = vmatpush.msra.mxu0 %v424
    %1142 = vmatpush.msra.mxu0 %v420
    %1143 = vmatpush.msra.mxu0 %v416
    %1144 = vmatpush.msra.mxu0 %v412
    %1145 = vmatpush.msra.mxu0 %v408
    %1146 = vmatpush.msra.mxu0 %v404
    %1147 = vmatpush.msra.mxu0 %v400
    %1148 = vmatpush.msra.mxu0 %v396
    %1149 = vmatmul.f32.gmra.mxu0 %v1065
    %v1150 = vpop.f32.mrf.mxu0
    %v1151 = vadd.f32 0.0, %v1150
    %1152 = vdwg.mxu0
    %v1153 = vadd.f32 %v1069, %v1091
    %v1154 = vadd.f32 %v1070, %v1111
    %v1155 = vadd.f32 %v1071, %v1131
    %v1156 = vadd.f32 %v1072, %v1151
    %v1157 = vxor.u32 %v1153, 2147483648
    %v1158 = vxor.u32 %v1154, 2147483648
    %v1159 = vxor.u32 %v1156, 2147483648
    %v1160 = vmul.f32 %v1157, 1.442695
    %v1161 = vpow.pop %v1160
    %v1162 = vmul.f32 %v1158, 1.442695
    %v1163 = vpow.pop %v1162
    %v1164 = vmul.f32 %v1159, 1.442695
    %v1165 = vpow.pop %v1164
    %v1166 = vadd.f32 %v1161, 1.0
    %v1167 = vadd.f32 %v1163, 1.0
    %v1168 = vadd.f32 %v1165, 1.0
    %v1169 = vrcp.pop %v1166
    %v1170 = vmul.f32 %v1166, %v1169
    %v1171 = vsub.f32 1.0, %v1170
    %v1172 = vmul.f32 %v1169, %v1171
    %v1173 = vadd.f32 %v1169, %v1172
    %vm1174 = vweird.f32 %v1166
    %vm1175 = vweird.f32 %v1169
    %vm1176 = vmor %vm1174, %vm1175
    %v1177 = vsel %vm1176, %v1169, %v1173
    %v1178 = vand.u32 2147483647, %v1166
    %vm1179 = vcmp.eq.f32.partialorder %v1178, 8.507059e+37
    %v1180 = vand.u32 %v1166, 2147483648
    %v1181 = vor.u32 1.1754944e-38, %v1180
    %v1182 = vsel %vm1179, %v1181, %v1177
    %v1183 = vmul.f32 1.0, %v1182
    %v1184 = vrcp.pop %v1167
    %v1185 = vmul.f32 %v1167, %v1184
    %v1186 = vsub.f32 1.0, %v1185
    %v1187 = vmul.f32 %v1184, %v1186
    %v1188 = vadd.f32 %v1184, %v1187
    %vm1189 = vweird.f32 %v1167
    %vm1190 = vweird.f32 %v1184
    %vm1191 = vmor %vm1189, %vm1190
    %v1192 = vsel %vm1191, %v1184, %v1188
    %v1193 = vand.u32 2147483647, %v1167
    %vm1194 = vcmp.eq.f32.partialorder %v1193, 8.507059e+37
    %v1195 = vand.u32 %v1167, 2147483648
    %v1196 = vor.u32 1.1754944e-38, %v1195
    %v1197 = vsel %vm1194, %v1196, %v1192
    %v1198 = vmul.f32 1.0, %v1197
    %v1199 = vrcp.pop %v1168
    %v1200 = vmul.f32 %v1168, %v1199
    %v1201 = vsub.f32 1.0, %v1200
    %v1202 = vmul.f32 %v1199, %v1201
    %v1203 = vadd.f32 %v1199, %v1202
    %vm1204 = vweird.f32 %v1168
    %vm1205 = vweird.f32 %v1199
    %vm1206 = vmor %vm1204, %vm1205
    %v1207 = vsel %vm1206, %v1199, %v1203
    %v1208 = vand.u32 2147483647, %v1168
    %vm1209 = vcmp.eq.f32.partialorder %v1208, 8.507059e+37
    %v1210 = vand.u32 %v1168, 2147483648
    %v1211 = vor.u32 1.1754944e-38, %v1210
    %v1212 = vsel %vm1209, %v1211, %v1207
    %v1213 = vmul.f32 1.0, %v1212
    %v1214 = vtanh.pop %v1155
    %v1215 = vmul.f32 %v1198, %v1063
    %v1216 = vmul.f32 %v1183, %v1214
    %v1217 = vadd.f32 %v1215, %v1216
    %v1218 = vtanh.pop %v1217
    %v1219 = vmul.f32 %v1213, %v1218
    %s1220 = smul.u32 5, 4
    %s1221 = smul.addr %s1220, 8
    %s1222 = scalar_lea.vmem [#allocation2], %s1221
    %v1223 = vld [vmem:[%s1222] sm:$0xff]
    %v1224 = vld [vmem:[%s1222 + $0x8] sm:$0xff]
    %v1225 = vld [vmem:[%s1222 + $0x10] sm:$0xff]
    %v1226 = vld [vmem:[%s1222 + $0x18] sm:$0xff]
    %1227 = vmatpush.msra.mxu0 %v453
    %1228 = vmatpush.msra.mxu0 %v449
    %1229 = vmatpush.msra.mxu0 %v445
    %1230 = vmatpush.msra.mxu0 %v441
    %1231 = vmatpush.msra.mxu0 %v437
    %1232 = vmatpush.msra.mxu0 %v433
    %1233 = vmatpush.msra.mxu0 %v429
    %1234 = vmatpush.msra.mxu0 %v425
    %1235 = vmatpush.msra.mxu0 %v421
    %1236 = vmatpush.msra.mxu0 %v417
    %1237 = vmatpush.msra.mxu0 %v413
    %1238 = vmatpush.msra.mxu0 %v409
    %1239 = vmatpush.msra.mxu0 %v405
    %1240 = vmatpush.msra.mxu0 %v401
    %1241 = vmatpush.msra.mxu0 %v397
    %1242 = vmatpush.msra.mxu0 %v393
    %1243 = vmatmul.f32.gmra.mxu0 %v1219
    %v1244 = vpop.f32.mrf.mxu0
    %v1245 = vadd.f32 0.0, %v1244
    %1246 = vdwg.mxu0
    %1247 = vmatpush.msra.mxu0 %v454
    %1248 = vmatpush.msra.mxu0 %v450
    %1249 = vmatpush.msra.mxu0 %v446
    %1250 = vmatpush.msra.mxu0 %v442
    %1251 = vmatpush.msra.mxu0 %v438
    %1252 = vmatpush.msra.mxu0 %v434
    %1253 = vmatpush.msra.mxu0 %v430
    %1254 = vmatpush.msra.mxu0 %v426
    %1255 = vmatpush.msra.mxu0 %v422
    %1256 = vmatpush.msra.mxu0 %v418
    %1257 = vmatpush.msra.mxu0 %v414
    %1258 = vmatpush.msra.mxu0 %v410
    %1259 = vmatpush.msra.mxu0 %v406
    %1260 = vmatpush.msra.mxu0 %v402
    %1261 = vmatpush.msra.mxu0 %v398
    %1262 = vmatpush.msra.mxu0 %v394
    %1263 = vmatmul.f32.gmra.mxu0 %v1219
    %v1264 = vpop.f32.mrf.mxu0
    %v1265 = vadd.f32 0.0, %v1264
    %1266 = vdwg.mxu0
    %1267 = vmatpush.msra.mxu0 %v455
    %1268 = vmatpush.msra.mxu0 %v451
    %1269 = vmatpush.msra.mxu0 %v447
    %1270 = vmatpush.msra.mxu0 %v443
    %1271 = vmatpush.msra.mxu0 %v439
    %1272 = vmatpush.msra.mxu0 %v435
    %1273 = vmatpush.msra.mxu0 %v431
    %1274 = vmatpush.msra.mxu0 %v427
    %1275 = vmatpush.msra.mxu0 %v423
    %1276 = vmatpush.msra.mxu0 %v419
    %1277 = vmatpush.msra.mxu0 %v415
    %1278 = vmatpush.msra.mxu0 %v411
    %1279 = vmatpush.msra.mxu0 %v407
    %1280 = vmatpush.msra.mxu0 %v403
    %1281 = vmatpush.msra.mxu0 %v399
    %1282 = vmatpush.msra.mxu0 %v395
    %1283 = vmatmul.f32.gmra.mxu0 %v1219
    %v1284 = vpop.f32.mrf.mxu0
    %v1285 = vadd.f32 0.0, %v1284
    %1286 = vdwg.mxu0
    %1287 = vmatpush.msra.mxu0 %v456
    %1288 = vmatpush.msra.mxu0 %v452
    %1289 = vmatpush.msra.mxu0 %v448
    %1290 = vmatpush.msra.mxu0 %v444
    %1291 = vmatpush.msra.mxu0 %v440
    %1292 = vmatpush.msra.mxu0 %v436
    %1293 = vmatpush.msra.mxu0 %v432
    %1294 = vmatpush.msra.mxu0 %v428
    %1295 = vmatpush.msra.mxu0 %v424
    %1296 = vmatpush.msra.mxu0 %v420
    %1297 = vmatpush.msra.mxu0 %v416
    %1298 = vmatpush.msra.mxu0 %v412
    %1299 = vmatpush.msra.mxu0 %v408
    %1300 = vmatpush.msra.mxu0 %v404
    %1301 = vmatpush.msra.mxu0 %v400
    %1302 = vmatpush.msra.mxu0 %v396
    %1303 = vmatmul.f32.gmra.mxu0 %v1219
    %v1304 = vpop.f32.mrf.mxu0
    %v1305 = vadd.f32 0.0, %v1304
    %1306 = vdwg.mxu0
    %v1307 = vadd.f32 %v1223, %v1245
    %v1308 = vadd.f32 %v1224, %v1265
    %v1309 = vadd.f32 %v1225, %v1285
    %v1310 = vadd.f32 %v1226, %v1305
    %v1311 = vxor.u32 %v1307, 2147483648
    %v1312 = vxor.u32 %v1308, 2147483648
    %v1313 = vxor.u32 %v1310, 2147483648
    %v1314 = vmul.f32 %v1311, 1.442695
    %v1315 = vpow.pop %v1314
    %v1316 = vmul.f32 %v1312, 1.442695
    %v1317 = vpow.pop %v1316
    %v1318 = vmul.f32 %v1313, 1.442695
    %v1319 = vpow.pop %v1318
    %v1320 = vadd.f32 %v1315, 1.0
    %v1321 = vadd.f32 %v1317, 1.0
    %v1322 = vadd.f32 %v1319, 1.0
    %v1323 = vrcp.pop %v1320
    %v1324 = vmul.f32 %v1320, %v1323
    %v1325 = vsub.f32 1.0, %v1324
    %v1326 = vmul.f32 %v1323, %v1325
    %v1327 = vadd.f32 %v1323, %v1326
    %vm1328 = vweird.f32 %v1320
    %vm1329 = vweird.f32 %v1323
    %vm1330 = vmor %vm1328, %vm1329
    %v1331 = vsel %vm1330, %v1323, %v1327
    %v1332 = vand.u32 2147483647, %v1320
    %vm1333 = vcmp.eq.f32.partialorder %v1332, 8.507059e+37
    %v1334 = vand.u32 %v1320, 2147483648
    %v1335 = vor.u32 1.1754944e-38, %v1334
    %v1336 = vsel %vm1333, %v1335, %v1331
    %v1337 = vmul.f32 1.0, %v1336
    %v1338 = vrcp.pop %v1321
    %v1339 = vmul.f32 %v1321, %v1338
    %v1340 = vsub.f32 1.0, %v1339
    %v1341 = vmul.f32 %v1338, %v1340
    %v1342 = vadd.f32 %v1338, %v1341
    %vm1343 = vweird.f32 %v1321
    %vm1344 = vweird.f32 %v1338
    %vm1345 = vmor %vm1343, %vm1344
    %v1346 = vsel %vm1345, %v1338, %v1342
    %v1347 = vand.u32 2147483647, %v1321
    %vm1348 = vcmp.eq.f32.partialorder %v1347, 8.507059e+37
    %v1349 = vand.u32 %v1321, 2147483648
    %v1350 = vor.u32 1.1754944e-38, %v1349
    %v1351 = vsel %vm1348, %v1350, %v1346
    %v1352 = vmul.f32 1.0, %v1351
    %v1353 = vrcp.pop %v1322
    %v1354 = vmul.f32 %v1322, %v1353
    %v1355 = vsub.f32 1.0, %v1354
    %v1356 = vmul.f32 %v1353, %v1355
    %v1357 = vadd.f32 %v1353, %v1356
    %vm1358 = vweird.f32 %v1322
    %vm1359 = vweird.f32 %v1353
    %vm1360 = vmor %vm1358, %vm1359
    %v1361 = vsel %vm1360, %v1353, %v1357
    %v1362 = vand.u32 2147483647, %v1322
    %vm1363 = vcmp.eq.f32.partialorder %v1362, 8.507059e+37
    %v1364 = vand.u32 %v1322, 2147483648
    %v1365 = vor.u32 1.1754944e-38, %v1364
    %v1366 = vsel %vm1363, %v1365, %v1361
    %v1367 = vmul.f32 1.0, %v1366
    %v1368 = vtanh.pop %v1309
    %v1369 = vmul.f32 %v1352, %v1217
    %v1370 = vmul.f32 %v1337, %v1368
    %v1371 = vadd.f32 %v1369, %v1370
    %v1372 = vtanh.pop %v1371
    %v1373 = vmul.f32 %v1367, %v1372
    %s1374 = smul.u32 6, 4
    %s1375 = smul.addr %s1374, 8
    %s1376 = scalar_lea.vmem [#allocation2], %s1375
    %v1377 = vld [vmem:[%s1376] sm:$0xff]
    %v1378 = vld [vmem:[%s1376 + $0x8] sm:$0xff]
    %v1379 = vld [vmem:[%s1376 + $0x10] sm:$0xff]
    %v1380 = vld [vmem:[%s1376 + $0x18] sm:$0xff]
    %1381 = vmatpush.msra.mxu0 %v453
    %1382 = vmatpush.msra.mxu0 %v449
    %1383 = vmatpush.msra.mxu0 %v445
    %1384 = vmatpush.msra.mxu0 %v441
    %1385 = vmatpush.msra.mxu0 %v437
    %1386 = vmatpush.msra.mxu0 %v433
    %1387 = vmatpush.msra.mxu0 %v429
    %1388 = vmatpush.msra.mxu0 %v425
    %1389 = vmatpush.msra.mxu0 %v421
    %1390 = vmatpush.msra.mxu0 %v417
    %1391 = vmatpush.msra.mxu0 %v413
    %1392 = vmatpush.msra.mxu0 %v409
    %1393 = vmatpush.msra.mxu0 %v405
    %1394 = vmatpush.msra.mxu0 %v401
    %1395 = vmatpush.msra.mxu0 %v397
    %1396 = vmatpush.msra.mxu0 %v393
    %1397 = vmatmul.f32.gmra.mxu0 %v1373
    %v1398 = vpop.f32.mrf.mxu0
    %v1399 = vadd.f32 0.0, %v1398
    %1400 = vdwg.mxu0
    %1401 = vmatpush.msra.mxu0 %v454
    %1402 = vmatpush.msra.mxu0 %v450
    %1403 = vmatpush.msra.mxu0 %v446
    %1404 = vmatpush.msra.mxu0 %v442
    %1405 = vmatpush.msra.mxu0 %v438
    %1406 = vmatpush.msra.mxu0 %v434
    %1407 = vmatpush.msra.mxu0 %v430
    %1408 = vmatpush.msra.mxu0 %v426
    %1409 = vmatpush.msra.mxu0 %v422
    %1410 = vmatpush.msra.mxu0 %v418
    %1411 = vmatpush.msra.mxu0 %v414
    %1412 = vmatpush.msra.mxu0 %v410
    %1413 = vmatpush.msra.mxu0 %v406
    %1414 = vmatpush.msra.mxu0 %v402
    %1415 = vmatpush.msra.mxu0 %v398
    %1416 = vmatpush.msra.mxu0 %v394
    %1417 = vmatmul.f32.gmra.mxu0 %v1373
    %v1418 = vpop.f32.mrf.mxu0
    %v1419 = vadd.f32 0.0, %v1418
    %1420 = vdwg.mxu0
    %1421 = vmatpush.msra.mxu0 %v455
    %1422 = vmatpush.msra.mxu0 %v451
    %1423 = vmatpush.msra.mxu0 %v447
    %1424 = vmatpush.msra.mxu0 %v443
    %1425 = vmatpush.msra.mxu0 %v439
    %1426 = vmatpush.msra.mxu0 %v435
    %1427 = vmatpush.msra.mxu0 %v431
    %1428 = vmatpush.msra.mxu0 %v427
    %1429 = vmatpush.msra.mxu0 %v423
    %1430 = vmatpush.msra.mxu0 %v419
    %1431 = vmatpush.msra.mxu0 %v415
    %1432 = vmatpush.msra.mxu0 %v411
    %1433 = vmatpush.msra.mxu0 %v407
    %1434 = vmatpush.msra.mxu0 %v403
    %1435 = vmatpush.msra.mxu0 %v399
    %1436 = vmatpush.msra.mxu0 %v395
    %1437 = vmatmul.f32.gmra.mxu0 %v1373
    %v1438 = vpop.f32.mrf.mxu0
    %v1439 = vadd.f32 0.0, %v1438
    %1440 = vdwg.mxu0
    %1441 = vmatpush.msra.mxu0 %v456
    %1442 = vmatpush.msra.mxu0 %v452
    %1443 = vmatpush.msra.mxu0 %v448
    %1444 = vmatpush.msra.mxu0 %v444
    %1445 = vmatpush.msra.mxu0 %v440
    %1446 = vmatpush.msra.mxu0 %v436
    %1447 = vmatpush.msra.mxu0 %v432
    %1448 = vmatpush.msra.mxu0 %v428
    %1449 = vmatpush.msra.mxu0 %v424
    %1450 = vmatpush.msra.mxu0 %v420
    %1451 = vmatpush.msra.mxu0 %v416
    %1452 = vmatpush.msra.mxu0 %v412
    %1453 = vmatpush.msra.mxu0 %v408
    %1454 = vmatpush.msra.mxu0 %v404
    %1455 = vmatpush.msra.mxu0 %v400
    %1456 = vmatpush.msra.mxu0 %v396
    %1457 = vmatmul.f32.gmra.mxu0 %v1373
    %v1458 = vpop.f32.mrf.mxu0
    %v1459 = vadd.f32 0.0, %v1458
    %1460 = vdwg.mxu0
    %v1461 = vadd.f32 %v1377, %v1399
    %v1462 = vadd.f32 %v1378, %v1419
    %v1463 = vadd.f32 %v1379, %v1439
    %v1464 = vadd.f32 %v1380, %v1459
    %v1465 = vxor.u32 %v1461, 2147483648
    %v1466 = vxor.u32 %v1462, 2147483648
    %v1467 = vxor.u32 %v1464, 2147483648
    %v1468 = vmul.f32 %v1465, 1.442695
    %v1469 = vpow.pop %v1468
    %v1470 = vmul.f32 %v1466, 1.442695
    %v1471 = vpow.pop %v1470
    %v1472 = vmul.f32 %v1467, 1.442695
    %v1473 = vpow.pop %v1472
    %v1474 = vadd.f32 %v1469, 1.0
    %v1475 = vadd.f32 %v1471, 1.0
    %v1476 = vadd.f32 %v1473, 1.0
    %v1477 = vrcp.pop %v1474
    %v1478 = vmul.f32 %v1474, %v1477
    %v1479 = vsub.f32 1.0, %v1478
    %v1480 = vmul.f32 %v1477, %v1479
    %v1481 = vadd.f32 %v1477, %v1480
    %vm1482 = vweird.f32 %v1474
    %vm1483 = vweird.f32 %v1477
    %vm1484 = vmor %vm1482, %vm1483
    %v1485 = vsel %vm1484, %v1477, %v1481
    %v1486 = vand.u32 2147483647, %v1474
    %vm1487 = vcmp.eq.f32.partialorder %v1486, 8.507059e+37
    %v1488 = vand.u32 %v1474, 2147483648
    %v1489 = vor.u32 1.1754944e-38, %v1488
    %v1490 = vsel %vm1487, %v1489, %v1485
    %v1491 = vmul.f32 1.0, %v1490
    %v1492 = vrcp.pop %v1475
    %v1493 = vmul.f32 %v1475, %v1492
    %v1494 = vsub.f32 1.0, %v1493
    %v1495 = vmul.f32 %v1492, %v1494
    %v1496 = vadd.f32 %v1492, %v1495
    %vm1497 = vweird.f32 %v1475
    %vm1498 = vweird.f32 %v1492
    %vm1499 = vmor %vm1497, %vm1498
    %v1500 = vsel %vm1499, %v1492, %v1496
    %v1501 = vand.u32 2147483647, %v1475
    %vm1502 = vcmp.eq.f32.partialorder %v1501, 8.507059e+37
    %v1503 = vand.u32 %v1475, 2147483648
    %v1504 = vor.u32 1.1754944e-38, %v1503
    %v1505 = vsel %vm1502, %v1504, %v1500
    %v1506 = vmul.f32 1.0, %v1505
    %v1507 = vrcp.pop %v1476
    %v1508 = vmul.f32 %v1476, %v1507
    %v1509 = vsub.f32 1.0, %v1508
    %v1510 = vmul.f32 %v1507, %v1509
    %v1511 = vadd.f32 %v1507, %v1510
    %vm1512 = vweird.f32 %v1476
    %vm1513 = vweird.f32 %v1507
    %vm1514 = vmor %vm1512, %vm1513
    %v1515 = vsel %vm1514, %v1507, %v1511
    %v1516 = vand.u32 2147483647, %v1476
    %vm1517 = vcmp.eq.f32.partialorder %v1516, 8.507059e+37
    %v1518 = vand.u32 %v1476, 2147483648
    %v1519 = vor.u32 1.1754944e-38, %v1518
    %v1520 = vsel %vm1517, %v1519, %v1515
    %v1521 = vmul.f32 1.0, %v1520
    %v1522 = vtanh.pop %v1463
    %v1523 = vmul.f32 %v1506, %v1371
    %v1524 = vmul.f32 %v1491, %v1522
    %v1525 = vadd.f32 %v1523, %v1524
    %v1526 = vtanh.pop %v1525
    %v1527 = vmul.f32 %v1521, %v1526
    %s1528 = smul.u32 7, 4
    %s1529 = smul.addr %s1528, 8
    %s1530 = scalar_lea.vmem [#allocation2], %s1529
    %v1531 = vld [vmem:[%s1530] sm:$0xff]
    %v1532 = vld [vmem:[%s1530 + $0x8] sm:$0xff]
    %v1533 = vld [vmem:[%s1530 + $0x10] sm:$0xff]
    %v1534 = vld [vmem:[%s1530 + $0x18] sm:$0xff]
    %1535 = vmatpush.msra.mxu0 %v453
    %1536 = vmatpush.msra.mxu0 %v449
    %1537 = vmatpush.msra.mxu0 %v445
    %1538 = vmatpush.msra.mxu0 %v441
    %1539 = vmatpush.msra.mxu0 %v437
    %1540 = vmatpush.msra.mxu0 %v433
    %1541 = vmatpush.msra.mxu0 %v429
    %1542 = vmatpush.msra.mxu0 %v425
    %1543 = vmatpush.msra.mxu0 %v421
    %1544 = vmatpush.msra.mxu0 %v417
    %1545 = vmatpush.msra.mxu0 %v413
    %1546 = vmatpush.msra.mxu0 %v409
    %1547 = vmatpush.msra.mxu0 %v405
    %1548 = vmatpush.msra.mxu0 %v401
    %1549 = vmatpush.msra.mxu0 %v397
    %1550 = vmatpush.msra.mxu0 %v393
    %1551 = vmatmul.f32.gmra.mxu0 %v1527
    %v1552 = vpop.f32.mrf.mxu0
    %v1553 = vadd.f32 0.0, %v1552
    %1554 = vdwg.mxu0
    %1555 = vmatpush.msra.mxu0 %v454
    %1556 = vmatpush.msra.mxu0 %v450
    %1557 = vmatpush.msra.mxu0 %v446
    %1558 = vmatpush.msra.mxu0 %v442
    %1559 = vmatpush.msra.mxu0 %v438
    %1560 = vmatpush.msra.mxu0 %v434
    %1561 = vmatpush.msra.mxu0 %v430
    %1562 = vmatpush.msra.mxu0 %v426
    %1563 = vmatpush.msra.mxu0 %v422
    %1564 = vmatpush.msra.mxu0 %v418
    %1565 = vmatpush.msra.mxu0 %v414
    %1566 = vmatpush.msra.mxu0 %v410
    %1567 = vmatpush.msra.mxu0 %v406
    %1568 = vmatpush.msra.mxu0 %v402
    %1569 = vmatpush.msra.mxu0 %v398
    %1570 = vmatpush.msra.mxu0 %v394
    %1571 = vmatmul.f32.gmra.mxu0 %v1527
    %v1572 = vpop.f32.mrf.mxu0
    %v1573 = vadd.f32 0.0, %v1572
    %1574 = vdwg.mxu0
    %1575 = vmatpush.msra.mxu0 %v455
    %1576 = vmatpush.msra.mxu0 %v451
    %1577 = vmatpush.msra.mxu0 %v447
    %1578 = vmatpush.msra.mxu0 %v443
    %1579 = vmatpush.msra.mxu0 %v439
    %1580 = vmatpush.msra.mxu0 %v435
    %1581 = vmatpush.msra.mxu0 %v431
    %1582 = vmatpush.msra.mxu0 %v427
    %1583 = vmatpush.msra.mxu0 %v423
    %1584 = vmatpush.msra.mxu0 %v419
    %1585 = vmatpush.msra.mxu0 %v415
    %1586 = vmatpush.msra.mxu0 %v411
    %1587 = vmatpush.msra.mxu0 %v407
    %1588 = vmatpush.msra.mxu0 %v403
    %1589 = vmatpush.msra.mxu0 %v399
    %1590 = vmatpush.msra.mxu0 %v395
    %1591 = vmatmul.f32.gmra.mxu0 %v1527
    %v1592 = vpop.f32.mrf.mxu0
    %v1593 = vadd.f32 0.0, %v1592
    %1594 = vdwg.mxu0
    %1595 = vmatpush.msra.mxu0 %v456
    %1596 = vmatpush.msra.mxu0 %v452
    %1597 = vmatpush.msra.mxu0 %v448
    %1598 = vmatpush.msra.mxu0 %v444
    %1599 = vmatpush.msra.mxu0 %v440
    %1600 = vmatpush.msra.mxu0 %v436
    %1601 = vmatpush.msra.mxu0 %v432
    %1602 = vmatpush.msra.mxu0 %v428
    %1603 = vmatpush.msra.mxu0 %v424
    %1604 = vmatpush.msra.mxu0 %v420
    %1605 = vmatpush.msra.mxu0 %v416
    %1606 = vmatpush.msra.mxu0 %v412
    %1607 = vmatpush.msra.mxu0 %v408
    %1608 = vmatpush.msra.mxu0 %v404
    %1609 = vmatpush.msra.mxu0 %v400
    %1610 = vmatpush.msra.mxu0 %v396
    %1611 = vmatmul.f32.gmra.mxu0 %v1527
    %v1612 = vpop.f32.mrf.mxu0
    %v1613 = vadd.f32 0.0, %v1612
    %1614 = vdwg.mxu0
    %v1615 = vadd.f32 %v1531, %v1553
    %v1616 = vadd.f32 %v1532, %v1573
    %v1617 = vadd.f32 %v1533, %v1593
    %v1618 = vadd.f32 %v1534, %v1613
    %v1619 = vxor.u32 %v1615, 2147483648
    %v1620 = vxor.u32 %v1616, 2147483648
    %v1621 = vxor.u32 %v1618, 2147483648
    %v1622 = vmul.f32 %v1619, 1.442695
    %v1623 = vpow.pop %v1622
    %v1624 = vmul.f32 %v1620, 1.442695
    %v1625 = vpow.pop %v1624
    %v1626 = vmul.f32 %v1621, 1.442695
    %v1627 = vpow.pop %v1626
    %v1628 = vadd.f32 %v1623, 1.0
    %v1629 = vadd.f32 %v1625, 1.0
    %v1630 = vadd.f32 %v1627, 1.0
    %v1631 = vrcp.pop %v1628
    %v1632 = vmul.f32 %v1628, %v1631
    %v1633 = vsub.f32 1.0, %v1632
    %v1634 = vmul.f32 %v1631, %v1633
    %v1635 = vadd.f32 %v1631, %v1634
    %vm1636 = vweird.f32 %v1628
    %vm1637 = vweird.f32 %v1631
    %vm1638 = vmor %vm1636, %vm1637
    %v1639 = vsel %vm1638, %v1631, %v1635
    %v1640 = vand.u32 2147483647, %v1628
    %vm1641 = vcmp.eq.f32.partialorder %v1640, 8.507059e+37
    %v1642 = vand.u32 %v1628, 2147483648
    %v1643 = vor.u32 1.1754944e-38, %v1642
    %v1644 = vsel %vm1641, %v1643, %v1639
    %v1645 = vmul.f32 1.0, %v1644
    %v1646 = vrcp.pop %v1629
    %v1647 = vmul.f32 %v1629, %v1646
    %v1648 = vsub.f32 1.0, %v1647
    %v1649 = vmul.f32 %v1646, %v1648
    %v1650 = vadd.f32 %v1646, %v1649
    %vm1651 = vweird.f32 %v1629
    %vm1652 = vweird.f32 %v1646
    %vm1653 = vmor %vm1651, %vm1652
    %v1654 = vsel %vm1653, %v1646, %v1650
    %v1655 = vand.u32 2147483647, %v1629
    %vm1656 = vcmp.eq.f32.partialorder %v1655, 8.507059e+37
    %v1657 = vand.u32 %v1629, 2147483648
    %v1658 = vor.u32 1.1754944e-38, %v1657
    %v1659 = vsel %vm1656, %v1658, %v1654
    %v1660 = vmul.f32 1.0, %v1659
    %v1661 = vrcp.pop %v1630
    %v1662 = vmul.f32 %v1630, %v1661
    %v1663 = vsub.f32 1.0, %v1662
    %v1664 = vmul.f32 %v1661, %v1663
    %v1665 = vadd.f32 %v1661, %v1664
    %vm1666 = vweird.f32 %v1630
    %vm1667 = vweird.f32 %v1661
    %vm1668 = vmor %vm1666, %vm1667
    %v1669 = vsel %vm1668, %v1661, %v1665
    %v1670 = vand.u32 2147483647, %v1630
    %vm1671 = vcmp.eq.f32.partialorder %v1670, 8.507059e+37
    %v1672 = vand.u32 %v1630, 2147483648
    %v1673 = vor.u32 1.1754944e-38, %v1672
    %v1674 = vsel %vm1671, %v1673, %v1669
    %v1675 = vmul.f32 1.0, %v1674
    %v1676 = vtanh.pop %v1617
    %v1677 = vmul.f32 %v1660, %v1525
    %v1678 = vmul.f32 %v1645, %v1676
    %v1679 = vadd.f32 %v1677, %v1678
    %v1680 = vtanh.pop %v1679
    %v1681 = vmul.f32 %v1675, %v1680
    %1682 = vst [vmem:[#allocation3] sm:$0xff] %v1681
    %1683 = vst [vmem:[#allocation4] sm:$0xff] %v1679
    // Predicated region
    $region50: #{tpu_custom_call.1} parent=1 // pred_check
      %p1684 = pneg %p100
    $region51: #{tpu_custom_call.1} parent=1 // pred_check_branch
      %1686 = sbr.rel (%p1684) target = $region53
    $region52: #{tpu_custom_call.1} parent=1 // pred_region
      %v1687 = vld [vmem:[#allocation13] sm:$0xff]
      %v1688 = vld [vmem:[#allocation13 + $0x8] sm:$0xff]
      %v1689 = vld [vmem:[#allocation13 + $0x10] sm:$0xff]
      %v1690 = vld [vmem:[#allocation13 + $0x18] sm:$0xff]
      %v1691 = vld [vmem:[#allocation13 + $0x20] sm:$0xff]
      %v1692 = vld [vmem:[#allocation13 + $0x28] sm:$0xff]
      %v1693 = vld [vmem:[#allocation13 + $0x30] sm:$0xff]
      %v1694 = vld [vmem:[#allocation13 + $0x38] sm:$0xff]
      %v1695 = vld [vmem:[#allocation13 + $0x40] sm:$0xff]
      %v1696 = vld [vmem:[#allocation13 + $0x48] sm:$0xff]
      %v1697 = vld [vmem:[#allocation13 + $0x50] sm:$0xff]
      %v1698 = vld [vmem:[#allocation13 + $0x58] sm:$0xff]
      %v1699 = vld [vmem:[#allocation13 + $0x60] sm:$0xff]
      %v1700 = vld [vmem:[#allocation13 + $0x68] sm:$0xff]
      %v1701 = vld [vmem:[#allocation13 + $0x70] sm:$0xff]
      %v1702 = vld [vmem:[#allocation13 + $0x78] sm:$0xff]
      %v1703 = vld [vmem:[%s5] sm:$0x1]
      %v1705 = vperm.slane %v1703, 0
      %1707 = vmatpush.msra.mxu0 %v1702
      %1708 = vmatpush.msra.mxu0 %v1701
      %1709 = vmatpush.msra.mxu0 %v1700
      %1710 = vmatpush.msra.mxu0 %v1699
      %1711 = vmatpush.msra.mxu0 %v1698
      %1712 = vmatpush.msra.mxu0 %v1697
      %1713 = vmatpush.msra.mxu0 %v1696
      %1714 = vmatpush.msra.mxu0 %v1695
      %1715 = vmatpush.msra.mxu0 %v1694
      %1716 = vmatpush.msra.mxu0 %v1693
      %1717 = vmatpush.msra.mxu0 %v1692
      %1718 = vmatpush.msra.mxu0 %v1691
      %1719 = vmatpush.msra.mxu0 %v1690
      %1720 = vmatpush.msra.mxu0 %v1689
      %1721 = vmatpush.msra.mxu0 %v1688
      %1722 = vmatpush.msra.mxu0 %v1687
      %1723 = vmatmul.f32.gmra.mxu0 %v1681
      %v1724 = vpop.f32.mrf.mxu0
      %v1725 = vadd.f32 %v1705, %v1724
      %1726 = vdwg.mxu0
      %1727 = vst [vmem:[#allocation14] sm:$0xff] %v1725
    $region53: #{tpu_custom_call.1} parent=1 // pred_fallthru
      _
    // Predicated region
    $region54: #{tpu_custom_call.1} parent=1 // pred_check
      _
    $region55: #{tpu_custom_call.1} parent=1 // pred_check_branch
      %1729 = sbr.rel (0) target = $region57
    $region56: #{tpu_custom_call.1} parent=1 // pred_region
      %1731 = vsyncadd [#allocation7], 0
      %s1733 = sshll.u32 [#allocation14], 4
      %s1734 = int_to_ptr.vmem [resolvable:$true] %s1733
      %s1735 = sshll.u32 %s6, 4
      %s1736 = int_to_ptr.hbm [resolvable:$true] %s1735
      %1738 = dma.vmem_to_hbm [thread:$0]  %s1734, 128, %s1736, [#allocation7]
    $region57: #{tpu_custom_call.1} parent=1 // pred_fallthru
      _
    // Predicated region
    $region58: #{tpu_custom_call.1} parent=1 // pred_check
      _
    $region59: #{tpu_custom_call.1} parent=1 // pred_check_branch
      %1740 = sbr.rel (0) target = $region61
    $region60: #{tpu_custom_call.1} parent=1 // pred_region
      %1742 = dma.done [#allocation7], 128
    $region61: #{tpu_custom_call.1} parent=1 // pred_fallthru
      _
    %1743 = vsyncpa [#allocation6], 1
    %1744 = vsyncpa [#allocation9], 1
    %1745 = vsyncpa [#allocation12], 1
    %1746 = vsyncpa [#allocation7], 1

</llo_original>
